<compile_context>
chip_gen: v6e
topology: v6e:2x2x1
jax: 0.10.0
libtpu: 0.0.40
codegen_flags: <defaults>
</compile_context>

<pallas_src>
import jax
import jax.numpy as jnp
from jax.experimental import pallas as pl
from jax.experimental.pallas import tpu as pltpu

EPS = 1e-5
LANE = 128


def _round_up(n, m):
    return ((n + m - 1) // m) * m


def _bn_train(h, gamma, beta):
    """Training-mode BatchNorm1d, folded to a single scale/shift per feature."""
    mu = jnp.mean(h, axis=0, keepdims=True)
    var = jnp.maximum(jnp.mean(h * h, axis=0, keepdims=True) - mu * mu, 0.0)
    scale = gamma * jax.lax.rsqrt(var + EPS)
    shift = beta - mu * scale
    return h * scale + shift


def _mynet_kernel(
    x_ref,
    wh1_ref, g0_ref, beta0_ref,
    rb_w1_ref, rb_g1_ref, rb_beta1_ref,
    rb_w2_ref, rb_g2_ref, rb_beta2_ref,
    rb_w3_ref,
    bn_g_ref, bn_beta_ref,
    wreg_ref, breg_ref,
    o_ref,
):
    x = x_ref[...]                                                    # (B, Dp)

    # hidden1 (bias cancels under bn0) -> bn0 -> tanh
    h = jnp.dot(x, wh1_ref[...], preferred_element_type=jnp.float32)
    h = jnp.tanh(_bn_train(h, g0_ref[...], beta0_ref[...]))

    # 3 x (ResidualBlock -> BN -> tanh); fc1/fc2/fc3 biases all cancel under
    # the BatchNorm that immediately follows them.
    for i in range(3):
        residual = h
        t = jnp.dot(h, rb_w1_ref[i], preferred_element_type=jnp.float32)
        t = jnp.tanh(_bn_train(t, rb_g1_ref[i], rb_beta1_ref[i]))
        t = jnp.dot(t, rb_w2_ref[i], preferred_element_type=jnp.float32)
        t = jnp.tanh(_bn_train(t, rb_g2_ref[i], rb_beta2_ref[i]))
        t = jnp.dot(t, rb_w3_ref[i], preferred_element_type=jnp.float32)
        h = t + residual
        h = jnp.tanh(_bn_train(h, bn_g_ref[i], bn_beta_ref[i]))

    # regression head keeps its bias (no BN after it)
    out = jnp.dot(h, wreg_ref[...], preferred_element_type=jnp.float32) + breg_ref[...]
    o_ref[...] = out.astype(o_ref.dtype)


def _pad2(a, rows, cols):
    return jnp.pad(a, ((0, rows - a.shape[0]), (0, cols - a.shape[1])))


def mynet_forward(x, params):
    """x: (B, input_dim) f32. params: dict from init_params (PyTorch shapes)."""
    B, D = x.shape
    H = params["g0"].shape[-1]              # 200
    H1 = params["rb"][0]["g1"].shape[-1]    # 100

    Dp = _round_up(D, LANE)
    Hp = _round_up(H, LANE)
    H1p = _round_up(H1, LANE)
    OUTP = LANE                             # regression output 1 -> lane-dense 128

    xp = _pad2(x, B, Dp)
    wh1 = _pad2(params["wh1"], Dp, Hp)
    g0 = _pad2(params["g0"], 1, Hp)         # padded gammas are 0 -> padded lanes stay 0
    beta0 = _pad2(params["beta0"], 1, Hp)

    rbs = params["rb"]
    rb_w1 = jnp.stack([_pad2(rb["w1"], Hp, H1p) for rb in rbs])
    rb_g1 = jnp.stack([_pad2(rb["g1"], 1, H1p) for rb in rbs])
    rb_beta1 = jnp.stack([_pad2(rb["beta1"], 1, H1p) for rb in rbs])
    rb_w2 = jnp.stack([_pad2(rb["w2"], H1p, Hp) for rb in rbs])
    rb_g2 = jnp.stack([_pad2(rb["g2"], 1, Hp) for rb in rbs])
    rb_beta2 = jnp.stack([_pad2(rb["beta2"], 1, Hp) for rb in rbs])
    rb_w3 = jnp.stack([_pad2(rb["w3"], Hp, Hp) for rb in rbs])

    bn_g = jnp.stack([_pad2(g, 1, Hp) for g in params["bn_g"]])
    bn_beta = jnp.stack([_pad2(b, 1, Hp) for b in params["bn_beta"]])

    wreg = _pad2(params["wreg"], Hp, OUTP)
    breg = _pad2(params["breg"], 1, OUTP)

    args = (xp, wh1, g0, beta0,
            rb_w1, rb_g1, rb_beta1, rb_w2, rb_g2, rb_beta2, rb_w3,
            bn_g, bn_beta, wreg, breg)

    flops = 2 * B * (Dp * Hp + 3 * (Hp * H1p + H1p * Hp + Hp * Hp) + Hp * OUTP)
    transcendentals = B * (Hp + 3 * (H1p + 2 * Hp))         # tanh count
    bytes_accessed = 4 * (sum(int(a.size) for a in args) + B * OUTP)

    vmem = pl.BlockSpec(memory_space=pltpu.MemorySpace.VMEM)
    out_padded = pl.pallas_call(
        _mynet_kernel,
        out_shape=jax.ShapeDtypeStruct((B, OUTP), x.dtype),
        in_specs=[vmem] * len(args),
        out_specs=vmem,
        cost_estimate=pl.CostEstimate(
            flops=flops,
            transcendentals=transcendentals,
            bytes_accessed=bytes_accessed,
        ),
    )(*args)
    return out_padded[:, :1]


def init_params(key, input_dim, hidden_dim=200, block_hidden=100):
    """PyTorch-shaped parameters; Linear weights stored transposed as (in, out)."""
    ks = iter(jax.random.split(key, 48))

    def linear(fan_in, fan_out):
        bound = 1.0 / (fan_in ** 0.5)
        w = jax.random.uniform(next(ks), (fan_in, fan_out), jnp.float32, -bound, bound)
        b = jax.random.uniform(next(ks), (1, fan_out), jnp.float32, -bound, bound)
        return w, b

    def bn_params(n):
        g = 1.0 + 0.1 * jax.random.normal(next(ks), (1, n), jnp.float32)
        b = 0.1 * jax.random.normal(next(ks), (1, n), jnp.float32)
        return g, b

    wh1, bh1 = linear(input_dim, hidden_dim)
    g0, beta0 = bn_params(hidden_dim)

    rb = []
    for _ in range(3):
        w1, b1 = linear(hidden_dim, block_hidden)
        g1, be1 = bn_params(block_hidden)
        w2, b2 = linear(block_hidden, hidden_dim)
        g2, be2 = bn_params(hidden_dim)
        w3, b3 = linear(hidden_dim, hidden_dim)
        rb.append(dict(w1=w1, b1=b1, g1=g1, beta1=be1,
                       w2=w2, b2=b2, g2=g2, beta2=be2,
                       w3=w3, b3=b3))

    bn_g, bn_beta = [], []
    for _ in range(3):
        g, b = bn_params(hidden_dim)
        bn_g.append(g)
        bn_beta.append(b)

    wreg, breg = linear(hidden_dim, 1)

    return dict(wh1=wh1, bh1=bh1, g0=g0, beta0=beta0, rb=rb,
                bn_g=bn_g, bn_beta=bn_beta, wreg=wreg, breg=breg)


def _reference(x, p):
    """Pure-JAX reference (keeps all Linear biases, two-pass BN stats)."""
    def bn(h, g, b):
        mu = jnp.mean(h, axis=0, keepdims=True)
        var = jnp.mean((h - mu) ** 2, axis=0, keepdims=True)
        return (h - mu) * jax.lax.rsqrt(var + EPS) * g + b

    def resblock(h, rb):
        t = jnp.tanh(bn(h @ rb["w1"] + rb["b1"], rb["g1"], rb["beta1"]))
        t = jnp.tanh(bn(t @ rb["w2"] + rb["b2"], rb["g2"], rb["beta2"]))
        return t @ rb["w3"] + rb["b3"] + h

    h = jnp.tanh(bn(x @ p["wh1"] + p["bh1"], p["g0"], p["beta0"]))
    for i in range(3):
        h = resblock(h, p["rb"][i])
        h = jnp.tanh(bn(h, p["bn_g"][i], p["bn_beta"][i]))
    return h @ p["wreg"] + p["breg"]


if __name__ == "__main__":
    key = jax.random.PRNGKey(0)
    k_x, k_p = jax.random.split(key)

    B, input_dim = 8, 16            # batch > 1 required for training-mode BN stats
    x = jax.random.normal(k_x, (B, input_dim), jnp.float32)
    params = init_params(k_p, input_dim)

    fwd = jax.jit(mynet_forward)
    out = jax.block_until_ready(fwd(x, params))

    ref = _reference(x, params)
    assert out.shape == (B, 1)
    assert jnp.allclose(out, ref, atol=1e-4, rtol=1e-4), float(
        jnp.max(jnp.abs(out - ref)))

    print("KERNEL_OK")
</pallas_src>

<mosaic_0001>
module attributes {stable_mosaic.version = 11 : i64} {
  func.func @_mynet_kernel(%arg0: memref<8x128xf32, #tpu.memory_space<vmem>>, %arg1: memref<128x256xf32, #tpu.memory_space<vmem>>, %arg2: memref<1x256xf32, #tpu.memory_space<vmem>>, %arg3: memref<1x256xf32, #tpu.memory_space<vmem>>, %arg4: memref<3x256x128xf32, #tpu.memory_space<vmem>>, %arg5: memref<3x1x128xf32, #tpu.memory_space<vmem>>, %arg6: memref<3x1x128xf32, #tpu.memory_space<vmem>>, %arg7: memref<3x128x256xf32, #tpu.memory_space<vmem>>, %arg8: memref<3x1x256xf32, #tpu.memory_space<vmem>>, %arg9: memref<3x1x256xf32, #tpu.memory_space<vmem>>, %arg10: memref<3x256x256xf32, #tpu.memory_space<vmem>>, %arg11: memref<3x1x256xf32, #tpu.memory_space<vmem>>, %arg12: memref<3x1x256xf32, #tpu.memory_space<vmem>>, %arg13: memref<256x128xf32, #tpu.memory_space<vmem>>, %arg14: memref<1x128xf32, #tpu.memory_space<vmem>>, %arg15: memref<8x128xf32, #tpu.memory_space<vmem>>) attributes {dimension_semantics = [], scalar_prefetch = 0 : i64, scratch_operands = 0 : i64, tpu.core_type = #tpu.core_type<tc>} {
    %c0 = arith.constant 0 : index
    %c0_0 = arith.constant 0 : index
    %0 = vector.load %arg0[%c0, %c0_0] : memref<8x128xf32, #tpu.memory_space<vmem>>, vector<8x128xf32>
    %c0_1 = arith.constant 0 : index
    %c0_2 = arith.constant 0 : index
    %1 = vector.load %arg1[%c0_1, %c0_2] : memref<128x256xf32, #tpu.memory_space<vmem>>, vector<128x256xf32>
    %cst = arith.constant dense<0.000000e+00> : vector<8x256xf32>
    %2 = tpu.matmul %0, %1, %cst {dimension_numbers = #tpu.dot_dimension_numbers<[1], [0], [0], [1], [0, 0, 1, 1], [], []>} : vector<8x128xf32>, vector<128x256xf32>, vector<8x256xf32> -> vector<8x256xf32>
    %c0_3 = arith.constant 0 : index
    %c0_4 = arith.constant 0 : index
    %3 = vector.load %arg2[%c0_3, %c0_4] : memref<1x256xf32, #tpu.memory_space<vmem>>, vector<1x256xf32>
    %c0_5 = arith.constant 0 : index
    %c0_6 = arith.constant 0 : index
    %4 = vector.load %arg3[%c0_5, %c0_6] : memref<1x256xf32, #tpu.memory_space<vmem>>, vector<1x256xf32>
    %cst_7 = arith.constant dense<0.000000e+00> : vector<256xf32>
    %5 = vector.multi_reduction <add>, %2, %cst_7 [0] : vector<8x256xf32> to vector<256xf32>
    %6 = vector.shape_cast %5 : vector<256xf32> to vector<1x256xf32>
    %cst_8 = arith.constant 8.000000e+00 : f32
    %7 = vector.broadcast %cst_8 : f32 to vector<1x256xf32>
    %8 = arith.divf %6, %7 : vector<1x256xf32>
    %9 = arith.mulf %2, %2 : vector<8x256xf32>
    %cst_9 = arith.constant dense<0.000000e+00> : vector<256xf32>
    %10 = vector.multi_reduction <add>, %9, %cst_9 [0] : vector<8x256xf32> to vector<256xf32>
    %11 = vector.shape_cast %10 : vector<256xf32> to vector<1x256xf32>
    %cst_10 = arith.constant 8.000000e+00 : f32
    %12 = vector.broadcast %cst_10 : f32 to vector<1x256xf32>
    %13 = arith.divf %11, %12 : vector<1x256xf32>
    %14 = arith.mulf %8, %8 : vector<1x256xf32>
    %15 = arith.subf %13, %14 : vector<1x256xf32>
    %cst_11 = arith.constant 0.000000e+00 : f32
    %16 = vector.broadcast %cst_11 : f32 to vector<1x256xf32>
    %17 = arith.maximumf %15, %16 : vector<1x256xf32>
    %cst_12 = arith.constant 9.99999974E-6 : f32
    %18 = vector.broadcast %cst_12 : f32 to vector<1x256xf32>
    %19 = arith.addf %17, %18 : vector<1x256xf32>
    %20 = math.rsqrt %19 : vector<1x256xf32>
    %21 = arith.mulf %3, %20 : vector<1x256xf32>
    %22 = arith.mulf %8, %21 : vector<1x256xf32>
    %23 = arith.subf %4, %22 : vector<1x256xf32>
    %24 = vector.broadcast %21 : vector<1x256xf32> to vector<8x256xf32>
    %25 = arith.mulf %2, %24 : vector<8x256xf32>
    %26 = vector.broadcast %23 : vector<1x256xf32> to vector<8x256xf32>
    %27 = arith.addf %25, %26 : vector<8x256xf32>
    %28 = math.tanh %27 : vector<8x256xf32>
    %c0_13 = arith.constant 0 : index
    %c0_14 = arith.constant 0 : index
    %c0_15 = arith.constant 0 : index
    %29 = vector.load %arg4[%c0_13, %c0_14, %c0_15] : memref<3x256x128xf32, #tpu.memory_space<vmem>>, vector<1x256x128xf32>
    %30 = vector.shape_cast %29 : vector<1x256x128xf32> to vector<256x128xf32>
    %cst_16 = arith.constant dense<0.000000e+00> : vector<8x128xf32>
    %31 = tpu.matmul %28, %30, %cst_16 {dimension_numbers = #tpu.dot_dimension_numbers<[1], [0], [0], [1], [0, 0, 1, 1], [], []>} : vector<8x256xf32>, vector<256x128xf32>, vector<8x128xf32> -> vector<8x128xf32>
    %c0_17 = arith.constant 0 : index
    %c0_18 = arith.constant 0 : index
    %c0_19 = arith.constant 0 : index
    %32 = vector.load %arg5[%c0_17, %c0_18, %c0_19] : memref<3x1x128xf32, #tpu.memory_space<vmem>>, vector<1x1x128xf32>
    %33 = vector.shape_cast %32 : vector<1x1x128xf32> to vector<1x128xf32>
    %c0_20 = arith.constant 0 : index
    %c0_21 = arith.constant 0 : index
    %c0_22 = arith.constant 0 : index
    %34 = vector.load %arg6[%c0_20, %c0_21, %c0_22] : memref<3x1x128xf32, #tpu.memory_space<vmem>>, vector<1x1x128xf32>
    %35 = vector.shape_cast %34 : vector<1x1x128xf32> to vector<1x128xf32>
    %cst_23 = arith.constant dense<0.000000e+00> : vector<128xf32>
    %36 = vector.multi_reduction <add>, %31, %cst_23 [0] : vector<8x128xf32> to vector<128xf32>
    %37 = vector.shape_cast %36 : vector<128xf32> to vector<1x128xf32>
    %cst_24 = arith.constant 8.000000e+00 : f32
    %38 = vector.broadcast %cst_24 : f32 to vector<1x128xf32>
    %39 = arith.divf %37, %38 : vector<1x128xf32>
    %40 = arith.mulf %31, %31 : vector<8x128xf32>
    %cst_25 = arith.constant dense<0.000000e+00> : vector<128xf32>
    %41 = vector.multi_reduction <add>, %40, %cst_25 [0] : vector<8x128xf32> to vector<128xf32>
    %42 = vector.shape_cast %41 : vector<128xf32> to vector<1x128xf32>
    %cst_26 = arith.constant 8.000000e+00 : f32
    %43 = vector.broadcast %cst_26 : f32 to vector<1x128xf32>
    %44 = arith.divf %42, %43 : vector<1x128xf32>
    %45 = arith.mulf %39, %39 : vector<1x128xf32>
    %46 = arith.subf %44, %45 : vector<1x128xf32>
    %cst_27 = arith.constant 0.000000e+00 : f32
    %47 = vector.broadcast %cst_27 : f32 to vector<1x128xf32>
    %48 = arith.maximumf %46, %47 : vector<1x128xf32>
    %cst_28 = arith.constant 9.99999974E-6 : f32
    %49 = vector.broadcast %cst_28 : f32 to vector<1x128xf32>
    %50 = arith.addf %48, %49 : vector<1x128xf32>
    %51 = math.rsqrt %50 : vector<1x128xf32>
    %52 = arith.mulf %33, %51 : vector<1x128xf32>
    %53 = arith.mulf %39, %52 : vector<1x128xf32>
    %54 = arith.subf %35, %53 : vector<1x128xf32>
    %55 = vector.broadcast %52 : vector<1x128xf32> to vector<8x128xf32>
    %56 = arith.mulf %31, %55 : vector<8x128xf32>
    %57 = vector.broadcast %54 : vector<1x128xf32> to vector<8x128xf32>
    %58 = arith.addf %56, %57 : vector<8x128xf32>
    %59 = math.tanh %58 : vector<8x128xf32>
    %c0_29 = arith.constant 0 : index
    %c0_30 = arith.constant 0 : index
    %c0_31 = arith.constant 0 : index
    %60 = vector.load %arg7[%c0_29, %c0_30, %c0_31] : memref<3x128x256xf32, #tpu.memory_space<vmem>>, vector<1x128x256xf32>
    %61 = vector.shape_cast %60 : vector<1x128x256xf32> to vector<128x256xf32>
    %cst_32 = arith.constant dense<0.000000e+00> : vector<8x256xf32>
    %62 = tpu.matmul %59, %61, %cst_32 {dimension_numbers = #tpu.dot_dimension_numbers<[1], [0], [0], [1], [0, 0, 1, 1], [], []>} : vector<8x128xf32>, vector<128x256xf32>, vector<8x256xf32> -> vector<8x256xf32>
    %c0_33 = arith.constant 0 : index
    %c0_34 = arith.constant 0 : index
    %c0_35 = arith.constant 0 : index
    %63 = vector.load %arg8[%c0_33, %c0_34, %c0_35] : memref<3x1x256xf32, #tpu.memory_space<vmem>>, vector<1x1x256xf32>
    %64 = vector.shape_cast %63 : vector<1x1x256xf32> to vector<1x256xf32>
    %c0_36 = arith.constant 0 : index
    %c0_37 = arith.constant 0 : index
    %c0_38 = arith.constant 0 : index
    %65 = vector.load %arg9[%c0_36, %c0_37, %c0_38] : memref<3x1x256xf32, #tpu.memory_space<vmem>>, vector<1x1x256xf32>
    %66 = vector.shape_cast %65 : vector<1x1x256xf32> to vector<1x256xf32>
    %cst_39 = arith.constant dense<0.000000e+00> : vector<256xf32>
    %67 = vector.multi_reduction <add>, %62, %cst_39 [0] : vector<8x256xf32> to vector<256xf32>
    %68 = vector.shape_cast %67 : vector<256xf32> to vector<1x256xf32>
    %cst_40 = arith.constant 8.000000e+00 : f32
    %69 = vector.broadcast %cst_40 : f32 to vector<1x256xf32>
    %70 = arith.divf %68, %69 : vector<1x256xf32>
    %71 = arith.mulf %62, %62 : vector<8x256xf32>
    %cst_41 = arith.constant dense<0.000000e+00> : vector<256xf32>
    %72 = vector.multi_reduction <add>, %71, %cst_41 [0] : vector<8x256xf32> to vector<256xf32>
    %73 = vector.shape_cast %72 : vector<256xf32> to vector<1x256xf32>
    %cst_42 = arith.constant 8.000000e+00 : f32
    %74 = vector.broadcast %cst_42 : f32 to vector<1x256xf32>
    %75 = arith.divf %73, %74 : vector<1x256xf32>
    %76 = arith.mulf %70, %70 : vector<1x256xf32>
    %77 = arith.subf %75, %76 : vector<1x256xf32>
    %cst_43 = arith.constant 0.000000e+00 : f32
    %78 = vector.broadcast %cst_43 : f32 to vector<1x256xf32>
    %79 = arith.maximumf %77, %78 : vector<1x256xf32>
    %cst_44 = arith.constant 9.99999974E-6 : f32
    %80 = vector.broadcast %cst_44 : f32 to vector<1x256xf32>
    %81 = arith.addf %79, %80 : vector<1x256xf32>
    %82 = math.rsqrt %81 : vector<1x256xf32>
    %83 = arith.mulf %64, %82 : vector<1x256xf32>
    %84 = arith.mulf %70, %83 : vector<1x256xf32>
    %85 = arith.subf %66, %84 : vector<1x256xf32>
    %86 = vector.broadcast %83 : vector<1x256xf32> to vector<8x256xf32>
    %87 = arith.mulf %62, %86 : vector<8x256xf32>
    %88 = vector.broadcast %85 : vector<1x256xf32> to vector<8x256xf32>
    %89 = arith.addf %87, %88 : vector<8x256xf32>
    %90 = math.tanh %89 : vector<8x256xf32>
    %c0_45 = arith.constant 0 : index
    %c0_46 = arith.constant 0 : index
    %c0_47 = arith.constant 0 : index
    %91 = vector.load %arg10[%c0_45, %c0_46, %c0_47] : memref<3x256x256xf32, #tpu.memory_space<vmem>>, vector<1x256x256xf32>
    %92 = vector.shape_cast %91 : vector<1x256x256xf32> to vector<256x256xf32>
    %cst_48 = arith.constant dense<0.000000e+00> : vector<8x256xf32>
    %93 = tpu.matmul %90, %92, %cst_48 {dimension_numbers = #tpu.dot_dimension_numbers<[1], [0], [0], [1], [0, 0, 1, 1], [], []>} : vector<8x256xf32>, vector<256x256xf32>, vector<8x256xf32> -> vector<8x256xf32>
    %94 = arith.addf %93, %28 : vector<8x256xf32>
    %c0_49 = arith.constant 0 : index
    %c0_50 = arith.constant 0 : index
    %c0_51 = arith.constant 0 : index
    %95 = vector.load %arg11[%c0_49, %c0_50, %c0_51] : memref<3x1x256xf32, #tpu.memory_space<vmem>>, vector<1x1x256xf32>
    %96 = vector.shape_cast %95 : vector<1x1x256xf32> to vector<1x256xf32>
    %c0_52 = arith.constant 0 : index
    %c0_53 = arith.constant 0 : index
    %c0_54 = arith.constant 0 : index
    %97 = vector.load %arg12[%c0_52, %c0_53, %c0_54] : memref<3x1x256xf32, #tpu.memory_space<vmem>>, vector<1x1x256xf32>
    %98 = vector.shape_cast %97 : vector<1x1x256xf32> to vector<1x256xf32>
    %cst_55 = arith.constant dense<0.000000e+00> : vector<256xf32>
    %99 = vector.multi_reduction <add>, %94, %cst_55 [0] : vector<8x256xf32> to vector<256xf32>
    %100 = vector.shape_cast %99 : vector<256xf32> to vector<1x256xf32>
    %cst_56 = arith.constant 8.000000e+00 : f32
    %101 = vector.broadcast %cst_56 : f32 to vector<1x256xf32>
    %102 = arith.divf %100, %101 : vector<1x256xf32>
    %103 = arith.mulf %94, %94 : vector<8x256xf32>
    %cst_57 = arith.constant dense<0.000000e+00> : vector<256xf32>
    %104 = vector.multi_reduction <add>, %103, %cst_57 [0] : vector<8x256xf32> to vector<256xf32>
    %105 = vector.shape_cast %104 : vector<256xf32> to vector<1x256xf32>
    %cst_58 = arith.constant 8.000000e+00 : f32
    %106 = vector.broadcast %cst_58 : f32 to vector<1x256xf32>
    %107 = arith.divf %105, %106 : vector<1x256xf32>
    %108 = arith.mulf %102, %102 : vector<1x256xf32>
    %109 = arith.subf %107, %108 : vector<1x256xf32>
    %cst_59 = arith.constant 0.000000e+00 : f32
    %110 = vector.broadcast %cst_59 : f32 to vector<1x256xf32>
    %111 = arith.maximumf %109, %110 : vector<1x256xf32>
    %cst_60 = arith.constant 9.99999974E-6 : f32
    %112 = vector.broadcast %cst_60 : f32 to vector<1x256xf32>
    %113 = arith.addf %111, %112 : vector<1x256xf32>
    %114 = math.rsqrt %113 : vector<1x256xf32>
    %115 = arith.mulf %96, %114 : vector<1x256xf32>
    %116 = arith.mulf %102, %115 : vector<1x256xf32>
    %117 = arith.subf %98, %116 : vector<1x256xf32>
    %118 = vector.broadcast %115 : vector<1x256xf32> to vector<8x256xf32>
    %119 = arith.mulf %94, %118 : vector<8x256xf32>
    %120 = vector.broadcast %117 : vector<1x256xf32> to vector<8x256xf32>
    %121 = arith.addf %119, %120 : vector<8x256xf32>
    %122 = math.tanh %121 : vector<8x256xf32>
    %c1 = arith.constant 1 : index
    %c0_61 = arith.constant 0 : index
    %c0_62 = arith.constant 0 : index
    %123 = vector.load %arg4[%c1, %c0_61, %c0_62] : memref<3x256x128xf32, #tpu.memory_space<vmem>>, vector<1x256x128xf32>
    %124 = vector.shape_cast %123 : vector<1x256x128xf32> to vector<256x128xf32>
    %cst_63 = arith.constant dense<0.000000e+00> : vector<8x128xf32>
    %125 = tpu.matmul %122, %124, %cst_63 {dimension_numbers = #tpu.dot_dimension_numbers<[1], [0], [0], [1], [0, 0, 1, 1], [], []>} : vector<8x256xf32>, vector<256x128xf32>, vector<8x128xf32> -> vector<8x128xf32>
    %c1_64 = arith.constant 1 : index
    %c0_65 = arith.constant 0 : index
    %c0_66 = arith.constant 0 : index
    %126 = vector.load %arg5[%c1_64, %c0_65, %c0_66] : memref<3x1x128xf32, #tpu.memory_space<vmem>>, vector<1x1x128xf32>
    %127 = vector.shape_cast %126 : vector<1x1x128xf32> to vector<1x128xf32>
    %c1_67 = arith.constant 1 : index
    %c0_68 = arith.constant 0 : index
    %c0_69 = arith.constant 0 : index
    %128 = vector.load %arg6[%c1_67, %c0_68, %c0_69] : memref<3x1x128xf32, #tpu.memory_space<vmem>>, vector<1x1x128xf32>
    %129 = vector.shape_cast %128 : vector<1x1x128xf32> to vector<1x128xf32>
    %cst_70 = arith.constant dense<0.000000e+00> : vector<128xf32>
    %130 = vector.multi_reduction <add>, %125, %cst_70 [0] : vector<8x128xf32> to vector<128xf32>
    %131 = vector.shape_cast %130 : vector<128xf32> to vector<1x128xf32>
    %cst_71 = arith.constant 8.000000e+00 : f32
    %132 = vector.broadcast %cst_71 : f32 to vector<1x128xf32>
    %133 = arith.divf %131, %132 : vector<1x128xf32>
    %134 = arith.mulf %125, %125 : vector<8x128xf32>
    %cst_72 = arith.constant dense<0.000000e+00> : vector<128xf32>
    %135 = vector.multi_reduction <add>, %134, %cst_72 [0] : vector<8x128xf32> to vector<128xf32>
    %136 = vector.shape_cast %135 : vector<128xf32> to vector<1x128xf32>
    %cst_73 = arith.constant 8.000000e+00 : f32
    %137 = vector.broadcast %cst_73 : f32 to vector<1x128xf32>
    %138 = arith.divf %136, %137 : vector<1x128xf32>
    %139 = arith.mulf %133, %133 : vector<1x128xf32>
    %140 = arith.subf %138, %139 : vector<1x128xf32>
    %cst_74 = arith.constant 0.000000e+00 : f32
    %141 = vector.broadcast %cst_74 : f32 to vector<1x128xf32>
    %142 = arith.maximumf %140, %141 : vector<1x128xf32>
    %cst_75 = arith.constant 9.99999974E-6 : f32
    %143 = vector.broadcast %cst_75 : f32 to vector<1x128xf32>
    %144 = arith.addf %142, %143 : vector<1x128xf32>
    %145 = math.rsqrt %144 : vector<1x128xf32>
    %146 = arith.mulf %127, %145 : vector<1x128xf32>
    %147 = arith.mulf %133, %146 : vector<1x128xf32>
    %148 = arith.subf %129, %147 : vector<1x128xf32>
    %149 = vector.broadcast %146 : vector<1x128xf32> to vector<8x128xf32>
    %150 = arith.mulf %125, %149 : vector<8x128xf32>
    %151 = vector.broadcast %148 : vector<1x128xf32> to vector<8x128xf32>
    %152 = arith.addf %150, %151 : vector<8x128xf32>
    %153 = math.tanh %152 : vector<8x128xf32>
    %c1_76 = arith.constant 1 : index
    %c0_77 = arith.constant 0 : index
    %c0_78 = arith.constant 0 : index
    %154 = vector.load %arg7[%c1_76, %c0_77, %c0_78] : memref<3x128x256xf32, #tpu.memory_space<vmem>>, vector<1x128x256xf32>
    %155 = vector.shape_cast %154 : vector<1x128x256xf32> to vector<128x256xf32>
    %cst_79 = arith.constant dense<0.000000e+00> : vector<8x256xf32>
    %156 = tpu.matmul %153, %155, %cst_79 {dimension_numbers = #tpu.dot_dimension_numbers<[1], [0], [0], [1], [0, 0, 1, 1], [], []>} : vector<8x128xf32>, vector<128x256xf32>, vector<8x256xf32> -> vector<8x256xf32>
    %c1_80 = arith.constant 1 : index
    %c0_81 = arith.constant 0 : index
    %c0_82 = arith.constant 0 : index
    %157 = vector.load %arg8[%c1_80, %c0_81, %c0_82] : memref<3x1x256xf32, #tpu.memory_space<vmem>>, vector<1x1x256xf32>
    %158 = vector.shape_cast %157 : vector<1x1x256xf32> to vector<1x256xf32>
    %c1_83 = arith.constant 1 : index
    %c0_84 = arith.constant 0 : index
    %c0_85 = arith.constant 0 : index
    %159 = vector.load %arg9[%c1_83, %c0_84, %c0_85] : memref<3x1x256xf32, #tpu.memory_space<vmem>>, vector<1x1x256xf32>
    %160 = vector.shape_cast %159 : vector<1x1x256xf32> to vector<1x256xf32>
    %cst_86 = arith.constant dense<0.000000e+00> : vector<256xf32>
    %161 = vector.multi_reduction <add>, %156, %cst_86 [0] : vector<8x256xf32> to vector<256xf32>
    %162 = vector.shape_cast %161 : vector<256xf32> to vector<1x256xf32>
    %cst_87 = arith.constant 8.000000e+00 : f32
    %163 = vector.broadcast %cst_87 : f32 to vector<1x256xf32>
    %164 = arith.divf %162, %163 : vector<1x256xf32>
    %165 = arith.mulf %156, %156 : vector<8x256xf32>
    %cst_88 = arith.constant dense<0.000000e+00> : vector<256xf32>
    %166 = vector.multi_reduction <add>, %165, %cst_88 [0] : vector<8x256xf32> to vector<256xf32>
    %167 = vector.shape_cast %166 : vector<256xf32> to vector<1x256xf32>
    %cst_89 = arith.constant 8.000000e+00 : f32
    %168 = vector.broadcast %cst_89 : f32 to vector<1x256xf32>
    %169 = arith.divf %167, %168 : vector<1x256xf32>
    %170 = arith.mulf %164, %164 : vector<1x256xf32>
    %171 = arith.subf %169, %170 : vector<1x256xf32>
    %cst_90 = arith.constant 0.000000e+00 : f32
    %172 = vector.broadcast %cst_90 : f32 to vector<1x256xf32>
    %173 = arith.maximumf %171, %172 : vector<1x256xf32>
    %cst_91 = arith.constant 9.99999974E-6 : f32
    %174 = vector.broadcast %cst_91 : f32 to vector<1x256xf32>
    %175 = arith.addf %173, %174 : vector<1x256xf32>
    %176 = math.rsqrt %175 : vector<1x256xf32>
    %177 = arith.mulf %158, %176 : vector<1x256xf32>
    %178 = arith.mulf %164, %177 : vector<1x256xf32>
    %179 = arith.subf %160, %178 : vector<1x256xf32>
    %180 = vector.broadcast %177 : vector<1x256xf32> to vector<8x256xf32>
    %181 = arith.mulf %156, %180 : vector<8x256xf32>
    %182 = vector.broadcast %179 : vector<1x256xf32> to vector<8x256xf32>
    %183 = arith.addf %181, %182 : vector<8x256xf32>
    %184 = math.tanh %183 : vector<8x256xf32>
    %c1_92 = arith.constant 1 : index
    %c0_93 = arith.constant 0 : index
    %c0_94 = arith.constant 0 : index
    %185 = vector.load %arg10[%c1_92, %c0_93, %c0_94] : memref<3x256x256xf32, #tpu.memory_space<vmem>>, vector<1x256x256xf32>
    %186 = vector.shape_cast %185 : vector<1x256x256xf32> to vector<256x256xf32>
    %cst_95 = arith.constant dense<0.000000e+00> : vector<8x256xf32>
    %187 = tpu.matmul %184, %186, %cst_95 {dimension_numbers = #tpu.dot_dimension_numbers<[1], [0], [0], [1], [0, 0, 1, 1], [], []>} : vector<8x256xf32>, vector<256x256xf32>, vector<8x256xf32> -> vector<8x256xf32>
    %188 = arith.addf %187, %122 : vector<8x256xf32>
    %c1_96 = arith.constant 1 : index
    %c0_97 = arith.constant 0 : index
    %c0_98 = arith.constant 0 : index
    %189 = vector.load %arg11[%c1_96, %c0_97, %c0_98] : memref<3x1x256xf32, #tpu.memory_space<vmem>>, vector<1x1x256xf32>
    %190 = vector.shape_cast %189 : vector<1x1x256xf32> to vector<1x256xf32>
    %c1_99 = arith.constant 1 : index
    %c0_100 = arith.constant 0 : index
    %c0_101 = arith.constant 0 : index
    %191 = vector.load %arg12[%c1_99, %c0_100, %c0_101] : memref<3x1x256xf32, #tpu.memory_space<vmem>>, vector<1x1x256xf32>
    %192 = vector.shape_cast %191 : vector<1x1x256xf32> to vector<1x256xf32>
    %cst_102 = arith.constant dense<0.000000e+00> : vector<256xf32>
    %193 = vector.multi_reduction <add>, %188, %cst_102 [0] : vector<8x256xf32> to vector<256xf32>
    %194 = vector.shape_cast %193 : vector<256xf32> to vector<1x256xf32>
    %cst_103 = arith.constant 8.000000e+00 : f32
    %195 = vector.broadcast %cst_103 : f32 to vector<1x256xf32>
    %196 = arith.divf %194, %195 : vector<1x256xf32>
    %197 = arith.mulf %188, %188 : vector<8x256xf32>
    %cst_104 = arith.constant dense<0.000000e+00> : vector<256xf32>
    %198 = vector.multi_reduction <add>, %197, %cst_104 [0] : vector<8x256xf32> to vector<256xf32>
    %199 = vector.shape_cast %198 : vector<256xf32> to vector<1x256xf32>
    %cst_105 = arith.constant 8.000000e+00 : f32
    %200 = vector.broadcast %cst_105 : f32 to vector<1x256xf32>
    %201 = arith.divf %199, %200 : vector<1x256xf32>
    %202 = arith.mulf %196, %196 : vector<1x256xf32>
    %203 = arith.subf %201, %202 : vector<1x256xf32>
    %cst_106 = arith.constant 0.000000e+00 : f32
    %204 = vector.broadcast %cst_106 : f32 to vector<1x256xf32>
    %205 = arith.maximumf %203, %204 : vector<1x256xf32>
    %cst_107 = arith.constant 9.99999974E-6 : f32
    %206 = vector.broadcast %cst_107 : f32 to vector<1x256xf32>
    %207 = arith.addf %205, %206 : vector<1x256xf32>
    %208 = math.rsqrt %207 : vector<1x256xf32>
    %209 = arith.mulf %190, %208 : vector<1x256xf32>
    %210 = arith.mulf %196, %209 : vector<1x256xf32>
    %211 = arith.subf %192, %210 : vector<1x256xf32>
    %212 = vector.broadcast %209 : vector<1x256xf32> to vector<8x256xf32>
    %213 = arith.mulf %188, %212 : vector<8x256xf32>
    %214 = vector.broadcast %211 : vector<1x256xf32> to vector<8x256xf32>
    %215 = arith.addf %213, %214 : vector<8x256xf32>
    %216 = math.tanh %215 : vector<8x256xf32>
    %c2 = arith.constant 2 : index
    %c0_108 = arith.constant 0 : index
    %c0_109 = arith.constant 0 : index
    %217 = vector.load %arg4[%c2, %c0_108, %c0_109] : memref<3x256x128xf32, #tpu.memory_space<vmem>>, vector<1x256x128xf32>
    %218 = vector.shape_cast %217 : vector<1x256x128xf32> to vector<256x128xf32>
    %cst_110 = arith.constant dense<0.000000e+00> : vector<8x128xf32>
    %219 = tpu.matmul %216, %218, %cst_110 {dimension_numbers = #tpu.dot_dimension_numbers<[1], [0], [0], [1], [0, 0, 1, 1], [], []>} : vector<8x256xf32>, vector<256x128xf32>, vector<8x128xf32> -> vector<8x128xf32>
    %c2_111 = arith.constant 2 : index
    %c0_112 = arith.constant 0 : index
    %c0_113 = arith.constant 0 : index
    %220 = vector.load %arg5[%c2_111, %c0_112, %c0_113] : memref<3x1x128xf32, #tpu.memory_space<vmem>>, vector<1x1x128xf32>
    %221 = vector.shape_cast %220 : vector<1x1x128xf32> to vector<1x128xf32>
    %c2_114 = arith.constant 2 : index
    %c0_115 = arith.constant 0 : index
    %c0_116 = arith.constant 0 : index
    %222 = vector.load %arg6[%c2_114, %c0_115, %c0_116] : memref<3x1x128xf32, #tpu.memory_space<vmem>>, vector<1x1x128xf32>
    %223 = vector.shape_cast %222 : vector<1x1x128xf32> to vector<1x128xf32>
    %cst_117 = arith.constant dense<0.000000e+00> : vector<128xf32>
    %224 = vector.multi_reduction <add>, %219, %cst_117 [0] : vector<8x128xf32> to vector<128xf32>
    %225 = vector.shape_cast %224 : vector<128xf32> to vector<1x128xf32>
    %cst_118 = arith.constant 8.000000e+00 : f32
    %226 = vector.broadcast %cst_118 : f32 to vector<1x128xf32>
    %227 = arith.divf %225, %226 : vector<1x128xf32>
    %228 = arith.mulf %219, %219 : vector<8x128xf32>
    %cst_119 = arith.constant dense<0.000000e+00> : vector<128xf32>
    %229 = vector.multi_reduction <add>, %228, %cst_119 [0] : vector<8x128xf32> to vector<128xf32>
    %230 = vector.shape_cast %229 : vector<128xf32> to vector<1x128xf32>
    %cst_120 = arith.constant 8.000000e+00 : f32
    %231 = vector.broadcast %cst_120 : f32 to vector<1x128xf32>
    %232 = arith.divf %230, %231 : vector<1x128xf32>
    %233 = arith.mulf %227, %227 : vector<1x128xf32>
    %234 = arith.subf %232, %233 : vector<1x128xf32>
    %cst_121 = arith.constant 0.000000e+00 : f32
    %235 = vector.broadcast %cst_121 : f32 to vector<1x128xf32>
    %236 = arith.maximumf %234, %235 : vector<1x128xf32>
    %cst_122 = arith.constant 9.99999974E-6 : f32
    %237 = vector.broadcast %cst_122 : f32 to vector<1x128xf32>
    %238 = arith.addf %236, %237 : vector<1x128xf32>
    %239 = math.rsqrt %238 : vector<1x128xf32>
    %240 = arith.mulf %221, %239 : vector<1x128xf32>
    %241 = arith.mulf %227, %240 : vector<1x128xf32>
    %242 = arith.subf %223, %241 : vector<1x128xf32>
    %243 = vector.broadcast %240 : vector<1x128xf32> to vector<8x128xf32>
    %244 = arith.mulf %219, %243 : vector<8x128xf32>
    %245 = vector.broadcast %242 : vector<1x128xf32> to vector<8x128xf32>
    %246 = arith.addf %244, %245 : vector<8x128xf32>
    %247 = math.tanh %246 : vector<8x128xf32>
    %c2_123 = arith.constant 2 : index
    %c0_124 = arith.constant 0 : index
    %c0_125 = arith.constant 0 : index
    %248 = vector.load %arg7[%c2_123, %c0_124, %c0_125] : memref<3x128x256xf32, #tpu.memory_space<vmem>>, vector<1x128x256xf32>
    %249 = vector.shape_cast %248 : vector<1x128x256xf32> to vector<128x256xf32>
    %cst_126 = arith.constant dense<0.000000e+00> : vector<8x256xf32>
    %250 = tpu.matmul %247, %249, %cst_126 {dimension_numbers = #tpu.dot_dimension_numbers<[1], [0], [0], [1], [0, 0, 1, 1], [], []>} : vector<8x128xf32>, vector<128x256xf32>, vector<8x256xf32> -> vector<8x256xf32>
    %c2_127 = arith.constant 2 : index
    %c0_128 = arith.constant 0 : index
    %c0_129 = arith.constant 0 : index
    %251 = vector.load %arg8[%c2_127, %c0_128, %c0_129] : memref<3x1x256xf32, #tpu.memory_space<vmem>>, vector<1x1x256xf32>
    %252 = vector.shape_cast %251 : vector<1x1x256xf32> to vector<1x256xf32>
    %c2_130 = arith.constant 2 : index
    %c0_131 = arith.constant 0 : index
    %c0_132 = arith.constant 0 : index
    %253 = vector.load %arg9[%c2_130, %c0_131, %c0_132] : memref<3x1x256xf32, #tpu.memory_space<vmem>>, vector<1x1x256xf32>
    %254 = vector.shape_cast %253 : vector<1x1x256xf32> to vector<1x256xf32>
    %cst_133 = arith.constant dense<0.000000e+00> : vector<256xf32>
    %255 = vector.multi_reduction <add>, %250, %cst_133 [0] : vector<8x256xf32> to vector<256xf32>
    %256 = vector.shape_cast %255 : vector<256xf32> to vector<1x256xf32>
    %cst_134 = arith.constant 8.000000e+00 : f32
    %257 = vector.broadcast %cst_134 : f32 to vector<1x256xf32>
    %258 = arith.divf %256, %257 : vector<1x256xf32>
    %259 = arith.mulf %250, %250 : vector<8x256xf32>
    %cst_135 = arith.constant dense<0.000000e+00> : vector<256xf32>
    %260 = vector.multi_reduction <add>, %259, %cst_135 [0] : vector<8x256xf32> to vector<256xf32>
    %261 = vector.shape_cast %260 : vector<256xf32> to vector<1x256xf32>
    %cst_136 = arith.constant 8.000000e+00 : f32
    %262 = vector.broadcast %cst_136 : f32 to vector<1x256xf32>
    %263 = arith.divf %261, %262 : vector<1x256xf32>
    %264 = arith.mulf %258, %258 : vector<1x256xf32>
    %265 = arith.subf %263, %264 : vector<1x256xf32>
    %cst_137 = arith.constant 0.000000e+00 : f32
    %266 = vector.broadcast %cst_137 : f32 to vector<1x256xf32>
    %267 = arith.maximumf %265, %266 : vector<1x256xf32>
    %cst_138 = arith.constant 9.99999974E-6 : f32
    %268 = vector.broadcast %cst_138 : f32 to vector<1x256xf32>
    %269 = arith.addf %267, %268 : vector<1x256xf32>
    %270 = math.rsqrt %269 : vector<1x256xf32>
    %271 = arith.mulf %252, %270 : vector<1x256xf32>
    %272 = arith.mulf %258, %271 : vector<1x256xf32>
    %273 = arith.subf %254, %272 : vector<1x256xf32>
    %274 = vector.broadcast %271 : vector<1x256xf32> to vector<8x256xf32>
    %275 = arith.mulf %250, %274 : vector<8x256xf32>
    %276 = vector.broadcast %273 : vector<1x256xf32> to vector<8x256xf32>
    %277 = arith.addf %275, %276 : vector<8x256xf32>
    %278 = math.tanh %277 : vector<8x256xf32>
    %c2_139 = arith.constant 2 : index
    %c0_140 = arith.constant 0 : index
    %c0_141 = arith.constant 0 : index
    %279 = vector.load %arg10[%c2_139, %c0_140, %c0_141] : memref<3x256x256xf32, #tpu.memory_space<vmem>>, vector<1x256x256xf32>
    %280 = vector.shape_cast %279 : vector<1x256x256xf32> to vector<256x256xf32>
    %cst_142 = arith.constant dense<0.000000e+00> : vector<8x256xf32>
    %281 = tpu.matmul %278, %280, %cst_142 {dimension_numbers = #tpu.dot_dimension_numbers<[1], [0], [0], [1], [0, 0, 1, 1], [], []>} : vector<8x256xf32>, vector<256x256xf32>, vector<8x256xf32> -> vector<8x256xf32>
    %282 = arith.addf %281, %216 : vector<8x256xf32>
    %c2_143 = arith.constant 2 : index
    %c0_144 = arith.constant 0 : index
    %c0_145 = arith.constant 0 : index
    %283 = vector.load %arg11[%c2_143, %c0_144, %c0_145] : memref<3x1x256xf32, #tpu.memory_space<vmem>>, vector<1x1x256xf32>
    %284 = vector.shape_cast %283 : vector<1x1x256xf32> to vector<1x256xf32>
    %c2_146 = arith.constant 2 : index
    %c0_147 = arith.constant 0 : index
    %c0_148 = arith.constant 0 : index
    %285 = vector.load %arg12[%c2_146, %c0_147, %c0_148] : memref<3x1x256xf32, #tpu.memory_space<vmem>>, vector<1x1x256xf32>
    %286 = vector.shape_cast %285 : vector<1x1x256xf32> to vector<1x256xf32>
    %cst_149 = arith.constant dense<0.000000e+00> : vector<256xf32>
    %287 = vector.multi_reduction <add>, %282, %cst_149 [0] : vector<8x256xf32> to vector<256xf32>
    %288 = vector.shape_cast %287 : vector<256xf32> to vector<1x256xf32>
    %cst_150 = arith.constant 8.000000e+00 : f32
    %289 = vector.broadcast %cst_150 : f32 to vector<1x256xf32>
    %290 = arith.divf %288, %289 : vector<1x256xf32>
    %291 = arith.mulf %282, %282 : vector<8x256xf32>
    %cst_151 = arith.constant dense<0.000000e+00> : vector<256xf32>
    %292 = vector.multi_reduction <add>, %291, %cst_151 [0] : vector<8x256xf32> to vector<256xf32>
    %293 = vector.shape_cast %292 : vector<256xf32> to vector<1x256xf32>
    %cst_152 = arith.constant 8.000000e+00 : f32
    %294 = vector.broadcast %cst_152 : f32 to vector<1x256xf32>
    %295 = arith.divf %293, %294 : vector<1x256xf32>
    %296 = arith.mulf %290, %290 : vector<1x256xf32>
    %297 = arith.subf %295, %296 : vector<1x256xf32>
    %cst_153 = arith.constant 0.000000e+00 : f32
    %298 = vector.broadcast %cst_153 : f32 to vector<1x256xf32>
    %299 = arith.maximumf %297, %298 : vector<1x256xf32>
    %cst_154 = arith.constant 9.99999974E-6 : f32
    %300 = vector.broadcast %cst_154 : f32 to vector<1x256xf32>
    %301 = arith.addf %299, %300 : vector<1x256xf32>
    %302 = math.rsqrt %301 : vector<1x256xf32>
    %303 = arith.mulf %284, %302 : vector<1x256xf32>
    %304 = arith.mulf %290, %303 : vector<1x256xf32>
    %305 = arith.subf %286, %304 : vector<1x256xf32>
    %306 = vector.broadcast %303 : vector<1x256xf32> to vector<8x256xf32>
    %307 = arith.mulf %282, %306 : vector<8x256xf32>
    %308 = vector.broadcast %305 : vector<1x256xf32> to vector<8x256xf32>
    %309 = arith.addf %307, %308 : vector<8x256xf32>
    %310 = math.tanh %309 : vector<8x256xf32>
    %c0_155 = arith.constant 0 : index
    %c0_156 = arith.constant 0 : index
    %311 = vector.load %arg13[%c0_155, %c0_156] : memref<256x128xf32, #tpu.memory_space<vmem>>, vector<256x128xf32>
    %cst_157 = arith.constant dense<0.000000e+00> : vector<8x128xf32>
    %312 = tpu.matmul %310, %311, %cst_157 {dimension_numbers = #tpu.dot_dimension_numbers<[1], [0], [0], [1], [0, 0, 1, 1], [], []>} : vector<8x256xf32>, vector<256x128xf32>, vector<8x128xf32> -> vector<8x128xf32>
    %c0_158 = arith.constant 0 : index
    %c0_159 = arith.constant 0 : index
    %313 = vector.load %arg14[%c0_158, %c0_159] : memref<1x128xf32, #tpu.memory_space<vmem>>, vector<1x128xf32>
    %314 = vector.broadcast %313 : vector<1x128xf32> to vector<8x128xf32>
    %315 = arith.addf %312, %314 : vector<8x128xf32>
    %c0_160 = arith.constant 0 : index
    %c0_161 = arith.constant 0 : index
    %316 = vector.load %arg15[%c0_160, %c0_161] : memref<8x128xf32, #tpu.memory_space<vmem>>, vector<8x128xf32>
    tpu.vector_store %arg15[%c0_160, %c0_161], %315 {strides = array<i32>} : memref<8x128xf32, #tpu.memory_space<vmem>>, vector<8x128xf32>,
    return
  }
}

</mosaic_0001>

<llo_original>
// kernel: mynet_forward.1
$region0: #{mynet_forward.1}
  #allocation0 [shape = 'u32[]', space=smem, size = 0x4, offset = 0x4, fixed_abs, tag = 'smem constant byte address 0x4 - core index']
  #allocation1 [shape = 'u32[144,128]{1,0:T(1,128)}', space=vmem, size = 0x12000, scoped, tag = 'internal scratch']
  %s0 = inlined_call_operand.vmem [shape: f32[8,128], index: 0, kind: input, shape index: {}]
  %s1 = inlined_call_operand.vmem [shape: f32[128,256], index: 1, kind: input, shape index: {}]
  %s2 = inlined_call_operand.vmem [shape: f32[1,256], index: 2, kind: input, shape index: {}]
  %s3 = inlined_call_operand.vmem [shape: f32[1,256], index: 3, kind: input, shape index: {}]
  %s4 = inlined_call_operand.vmem [shape: f32[3,256,128], index: 4, kind: input, shape index: {}]
  %s5 = inlined_call_operand.vmem [shape: f32[3,1,128], index: 5, kind: input, shape index: {}]
  %s6 = inlined_call_operand.vmem [shape: f32[3,1,128], index: 6, kind: input, shape index: {}]
  %s7 = inlined_call_operand.vmem [shape: f32[3,128,256], index: 7, kind: input, shape index: {}]
  %s8 = inlined_call_operand.vmem [shape: f32[3,1,256], index: 8, kind: input, shape index: {}]
  %s9 = inlined_call_operand.vmem [shape: f32[3,1,256], index: 9, kind: input, shape index: {}]
  %s10 = inlined_call_operand.vmem [shape: f32[3,256,256], index: 10, kind: input, shape index: {}]
  %s11 = inlined_call_operand.vmem [shape: f32[3,1,256], index: 11, kind: input, shape index: {}]
  %s12 = inlined_call_operand.vmem [shape: f32[3,1,256], index: 12, kind: input, shape index: {}]
  %s13 = inlined_call_operand.vmem [shape: f32[256,128], index: 13, kind: input, shape index: {}]
  %s14 = inlined_call_operand.vmem [shape: f32[1,128], index: 14, kind: input, shape index: {}]
  %s15 = inlined_call_operand.vmem [shape: f32[8,128], index: 15, kind: output, shape index: {}]
  %s16 = sld [smem:[#allocation0]]
  $region70: #{mynet_forward.1} parent=0
    _
  %s18 = ssub.s32 1, %s16
  %s19 = scalar_select 0, %s18, %s16
  // Predicated region
  $region2: #{mynet_forward.1} parent=0 // pred_check
    _
  $region3: #{mynet_forward.1} parent=0 // pred_check_branch
    %21 = sbr.rel (0) target = $region5
  $region4: #{mynet_forward.1} parent=0 // pred_region
    _
  $region5: #{mynet_forward.1} parent=0 // pred_fallthru
    _
  // Predicated region
  $region6: #{mynet_forward.1} parent=0 // pred_check
    _
  $region7: #{mynet_forward.1} parent=0 // pred_check_branch
    %23 = sbr.rel (0) target = $region9
  $region8: #{mynet_forward.1} parent=0 // pred_region
    _
  $region9: #{mynet_forward.1} parent=0 // pred_fallthru
    _
  // Predicated region
  $region10: #{mynet_forward.1} parent=0 // pred_check
    _
  $region11: #{mynet_forward.1} parent=0 // pred_check_branch
    %25 = sbr.rel (0) target = $region13
  $region12: #{mynet_forward.1} parent=0 // pred_region
    _
  $region13: #{mynet_forward.1} parent=0 // pred_fallthru
    _
  // Predicated region
  $region14: #{mynet_forward.1} parent=0 // pred_check
    _
  $region15: #{mynet_forward.1} parent=0 // pred_check_branch
    %27 = sbr.rel (0) target = $region17
  $region16: #{mynet_forward.1} parent=0 // pred_region
    _
  $region17: #{mynet_forward.1} parent=0 // pred_fallthru
    _
  // Predicated region
  $region18: #{mynet_forward.1} parent=0 // pred_check
    _
  $region19: #{mynet_forward.1} parent=0 // pred_check_branch
    %29 = sbr.rel (0) target = $region21
  $region20: #{mynet_forward.1} parent=0 // pred_region
    _
  $region21: #{mynet_forward.1} parent=0 // pred_fallthru
    _
  // Predicated region
  $region22: #{mynet_forward.1} parent=0 // pred_check
    _
  $region23: #{mynet_forward.1} parent=0 // pred_check_branch
    %31 = sbr.rel (0) target = $region25
  $region24: #{mynet_forward.1} parent=0 // pred_region
    _
  $region25: #{mynet_forward.1} parent=0 // pred_fallthru
    _
  // Predicated region
  $region26: #{mynet_forward.1} parent=0 // pred_check
    _
  $region27: #{mynet_forward.1} parent=0 // pred_check_branch
    %33 = sbr.rel (0) target = $region29
  $region28: #{mynet_forward.1} parent=0 // pred_region
    _
  $region29: #{mynet_forward.1} parent=0 // pred_fallthru
    _
  // Predicated region
  $region30: #{mynet_forward.1} parent=0 // pred_check
    _
  $region31: #{mynet_forward.1} parent=0 // pred_check_branch
    %35 = sbr.rel (0) target = $region33
  $region32: #{mynet_forward.1} parent=0 // pred_region
    _
  $region33: #{mynet_forward.1} parent=0 // pred_fallthru
    _
  // Predicated region
  $region34: #{mynet_forward.1} parent=0 // pred_check
    _
  $region35: #{mynet_forward.1} parent=0 // pred_check_branch
    %37 = sbr.rel (0) target = $region37
  $region36: #{mynet_forward.1} parent=0 // pred_region
    _
  $region37: #{mynet_forward.1} parent=0 // pred_fallthru
    _
  // Predicated region
  $region38: #{mynet_forward.1} parent=0 // pred_check
    _
  $region39: #{mynet_forward.1} parent=0 // pred_check_branch
    %39 = sbr.rel (0) target = $region41
  $region40: #{mynet_forward.1} parent=0 // pred_region
    _
  $region41: #{mynet_forward.1} parent=0 // pred_fallthru
    _
  // Predicated region
  $region42: #{mynet_forward.1} parent=0 // pred_check
    _
  $region43: #{mynet_forward.1} parent=0 // pred_check_branch
    %41 = sbr.rel (0) target = $region45
  $region44: #{mynet_forward.1} parent=0 // pred_region
    _
  $region45: #{mynet_forward.1} parent=0 // pred_fallthru
    _
  // Predicated region
  $region46: #{mynet_forward.1} parent=0 // pred_check
    _
  $region47: #{mynet_forward.1} parent=0 // pred_check_branch
    %43 = sbr.rel (0) target = $region49
  $region48: #{mynet_forward.1} parent=0 // pred_region
    _
  $region49: #{mynet_forward.1} parent=0 // pred_fallthru
    _
  // Predicated region
  $region50: #{mynet_forward.1} parent=0 // pred_check
    _
  $region51: #{mynet_forward.1} parent=0 // pred_check_branch
    %45 = sbr.rel (0) target = $region53
  $region52: #{mynet_forward.1} parent=0 // pred_region
    _
  $region53: #{mynet_forward.1} parent=0 // pred_fallthru
    _
  // Predicated region
  $region54: #{mynet_forward.1} parent=0 // pred_check
    _
  $region55: #{mynet_forward.1} parent=0 // pred_check_branch
    %47 = sbr.rel (0) target = $region57
  $region56: #{mynet_forward.1} parent=0 // pred_region
    _
  $region57: #{mynet_forward.1} parent=0 // pred_fallthru
    _
  // Predicated region
  $region58: #{mynet_forward.1} parent=0 // pred_check
    _
  $region59: #{mynet_forward.1} parent=0 // pred_check_branch
    %49 = sbr.rel (0) target = $region61
  $region60: #{mynet_forward.1} parent=0 // pred_region
    _
  $region61: #{mynet_forward.1} parent=0 // pred_fallthru
    _
  %v50 = vld [vmem:[%s0] sm:$0xff]
  %v51 = vld [vmem:[%s1] sm:$0xff]
  %v52 = vld [vmem:[%s1 + $0x8] sm:$0xff]
  %v53 = vld [vmem:[%s1 + $0x10] sm:$0xff]
  %v54 = vld [vmem:[%s1 + $0x18] sm:$0xff]
  %v55 = vld [vmem:[%s1 + $0x20] sm:$0xff]
  %v56 = vld [vmem:[%s1 + $0x28] sm:$0xff]
  %v57 = vld [vmem:[%s1 + $0x30] sm:$0xff]
  %v58 = vld [vmem:[%s1 + $0x38] sm:$0xff]
  %v59 = vld [vmem:[%s1 + $0x40] sm:$0xff]
  %v60 = vld [vmem:[%s1 + $0x48] sm:$0xff]
  %v61 = vld [vmem:[%s1 + $0x50] sm:$0xff]
  %v62 = vld [vmem:[%s1 + $0x58] sm:$0xff]
  %v63 = vld [vmem:[%s1 + $0x60] sm:$0xff]
  %v64 = vld [vmem:[%s1 + $0x68] sm:$0xff]
  %v65 = vld [vmem:[%s1 + $0x70] sm:$0xff]
  %v66 = vld [vmem:[%s1 + $0x78] sm:$0xff]
  %v67 = vld [vmem:[%s1 + $0x80] sm:$0xff]
  %v68 = vld [vmem:[%s1 + $0x88] sm:$0xff]
  %v69 = vld [vmem:[%s1 + $0x90] sm:$0xff]
  %v70 = vld [vmem:[%s1 + $0x98] sm:$0xff]
  %v71 = vld [vmem:[%s1 + $0xa0] sm:$0xff]
  %v72 = vld [vmem:[%s1 + $0xa8] sm:$0xff]
  %v73 = vld [vmem:[%s1 + $0xb0] sm:$0xff]
  %v74 = vld [vmem:[%s1 + $0xb8] sm:$0xff]
  %v75 = vld [vmem:[%s1 + $0xc0] sm:$0xff]
  %v76 = vld [vmem:[%s1 + $0xc8] sm:$0xff]
  %v77 = vld [vmem:[%s1 + $0xd0] sm:$0xff]
  %v78 = vld [vmem:[%s1 + $0xd8] sm:$0xff]
  %v79 = vld [vmem:[%s1 + $0xe0] sm:$0xff]
  %v80 = vld [vmem:[%s1 + $0xe8] sm:$0xff]
  %v81 = vld [vmem:[%s1 + $0xf0] sm:$0xff]
  %v82 = vld [vmem:[%s1 + $0xf8] sm:$0xff]
  %83 = vmatprep.subr.mxu0 %v82
  %84 = vmatpush1.msra.mxu0 %v81
  %85 = vmatprep.subr.mxu0 %v80
  %86 = vmatpush1.msra.mxu0 %v79
  %87 = vmatprep.subr.mxu0 %v78
  %88 = vmatpush1.msra.mxu0 %v77
  %89 = vmatprep.subr.mxu0 %v76
  %90 = vmatpush1.msra.mxu0 %v75
  %91 = vmatprep.subr.mxu0 %v74
  %92 = vmatpush1.msra.mxu0 %v73
  %93 = vmatprep.subr.mxu0 %v72
  %94 = vmatpush1.msra.mxu0 %v71
  %95 = vmatprep.subr.mxu0 %v70
  %96 = vmatpush1.msra.mxu0 %v69
  %97 = vmatprep.subr.mxu0 %v68
  %98 = vmatpush1.msra.mxu0 %v67
  %99 = vmatprep.subr.mxu0 %v66
  %100 = vmatpush1.msra.mxu0 %v65
  %101 = vmatprep.subr.mxu0 %v64
  %102 = vmatpush1.msra.mxu0 %v63
  %103 = vmatprep.subr.mxu0 %v62
  %104 = vmatpush1.msra.mxu0 %v61
  %105 = vmatprep.subr.mxu0 %v60
  %106 = vmatpush1.msra.mxu0 %v59
  %107 = vmatprep.subr.mxu0 %v58
  %108 = vmatpush1.msra.mxu0 %v57
  %109 = vmatprep.subr.mxu0 %v56
  %110 = vmatpush1.msra.mxu0 %v55
  %111 = vmatprep.subr.mxu0 %v54
  %112 = vmatpush1.msra.mxu0 %v53
  %113 = vmatprep.subr.mxu0 %v52
  %114 = vmatpush1.msra.mxu0 %v51
  %115 = vmatprep.subr.mxu0 0.0
  %116 = vmatpush2.msra.mxu0 0.0
  %117 = vmatprep.subr.mxu0 0.0
  %118 = vmatpush2.msra.mxu0 0.0
  %119 = vmatprep.subr.mxu0 0.0
  %120 = vmatpush2.msra.mxu0 0.0
  %121 = vmatprep.subr.mxu0 0.0
  %122 = vmatpush2.msra.mxu0 0.0
  %123 = vmatprep.subr.mxu0 0.0
  %124 = vmatpush2.msra.mxu0 0.0
  %125 = vmatprep.subr.mxu0 0.0
  %126 = vmatpush2.msra.mxu0 0.0
  %127 = vmatprep.subr.mxu0 0.0
  %128 = vmatpush2.msra.mxu0 0.0
  %129 = vmatprep.subr.mxu0 0.0
  %130 = vmatpush2.msra.mxu0 0.0
  %131 = vmatprep.subr.mxu0 0.0
  %132 = vmatpush2.msra.mxu0 0.0
  %133 = vmatprep.subr.mxu0 0.0
  %134 = vmatpush2.msra.mxu0 0.0
  %135 = vmatprep.subr.mxu0 0.0
  %136 = vmatpush2.msra.mxu0 0.0
  %137 = vmatprep.subr.mxu0 0.0
  %138 = vmatpush2.msra.mxu0 0.0
  %139 = vmatprep.subr.mxu0 0.0
  %140 = vmatpush2.msra.mxu0 0.0
  %141 = vmatprep.subr.mxu0 0.0
  %142 = vmatpush2.msra.mxu0 0.0
  %143 = vmatprep.subr.mxu0 0.0
  %144 = vmatpush2.msra.mxu0 0.0
  %145 = vmatprep.subr.mxu0 0.0
  %146 = vmatpush2.msra.mxu0 0.0
  %147 = vmatprep.mubr.f32.mxu0 0.0
  %148 = vmatmul.mubr.f32.gmra.mxu0 %v50
  %v149 = vpop.f32.mrf.mxu0
  %v150 = vadd.f32 0.0, %v149
  %v151 = vpop.f32.mrf.mxu0
  %v152 = vadd.f32 0.0, %v151
  %153 = vdwg.mxu0
  %v154 = vld [vmem:[%s2] sm:$0x3]
  %v155 = vld [vmem:[%s3] sm:$0x3]
  %v156 = vrot.slane %v150, 4
  %v157 = vadd.f32 %v150, %v156
  %v158 = vrot.slane %v157, 2
  %v159 = vadd.f32 %v157, %v158
  %v160 = vrot.slane %v159, 1
  %v161 = vadd.f32 %v159, %v160
  %v162 = vrot.slane %v152, 4
  %v163 = vadd.f32 %v152, %v162
  %v164 = vrot.slane %v163, 2
  %v165 = vadd.f32 %v163, %v164
  %v166 = vrot.slane %v165, 1
  %v167 = vadd.f32 %v165, %v166
  %v168 = vrcp.pop 8.0
  %v169 = vmul.f32 %v161, %v168
  %v170 = vmul.f32 %v167, %v168
  %v171 = vmul.f32 %v150, %v150
  %v172 = vmul.f32 %v152, %v152
  %v173 = vrot.slane %v171, 4
  %v174 = vadd.f32 %v171, %v173
  %v175 = vrot.slane %v174, 2
  %v176 = vadd.f32 %v174, %v175
  %v177 = vrot.slane %v176, 1
  %v178 = vadd.f32 %v176, %v177
  %v179 = vrot.slane %v172, 4
  %v180 = vadd.f32 %v172, %v179
  %v181 = vrot.slane %v180, 2
  %v182 = vadd.f32 %v180, %v181
  %v183 = vrot.slane %v182, 1
  %v184 = vadd.f32 %v182, %v183
  %v185 = vmul.f32 %v178, %v168
  %v186 = vmul.f32 %v184, %v168
  %v187 = vmul.f32 %v169, %v169
  %v188 = vmul.f32 %v170, %v170
  %v189 = vsub.f32 %v185, %v187
  %v190 = vsub.f32 %v186, %v188
  %v191 = vmax.f32 %v189, 0.0
  %v192 = vmax.f32 %v190, 0.0
  %v193 = vadd.f32 %v191, 1e-05
  %v194 = vadd.f32 %v192, 1e-05
  %v195 = vrsqrt.pop %v193
  %v196 = vrsqrt.pop %v194
  %v199 = vcombine.low %v195, %v196
  %v201 = vunpack.c.l.s4 1966171168
  %v202 = vunpack.c.0.s8 %v201
  %v203 = vlaneseq
  %v204 = vshrl.u32 %v203, 7
  %v205 = vsub.s32 %v202, %v204
  %v206 = vrot.slane %v199, %v205
  %v208 = vunpack.c.l.s4 1966171168
  %v209 = vunpack.c.0.s8 %v208
  %v210 = vlaneseq
  %v211 = vshrl.u32 %v210, 7
  %v212 = vsub.s32 %v209, %v211
  %v213 = vrot.slane %v206, %v212
  %v215 = vmul.f32 %v154, %v213
  %v217 = vlaneseq
  %v218 = vshrl.u32 %v217, 7
  %v219 = vsub.s32 0, %v218
  %v220 = vrot.slane %v215, %v219
  %v221 = vlaneseq
  %v222 = vshrl.u32 %v221, 7
  %v223 = vsub.s32 1, %v222
  %v224 = vrot.slane %v215, %v223
  %v227 = vmul.f32 %v169, %v220
  %v228 = vmul.f32 %v170, %v224
  %v231 = vcombine.low %v227, %v228
  %v233 = vunpack.c.l.s4 1966171168
  %v234 = vunpack.c.0.s8 %v233
  %v235 = vlaneseq
  %v236 = vshrl.u32 %v235, 7
  %v237 = vsub.s32 %v234, %v236
  %v238 = vrot.slane %v231, %v237
  %v240 = vunpack.c.l.s4 1966171168
  %v241 = vunpack.c.0.s8 %v240
  %v242 = vlaneseq
  %v243 = vshrl.u32 %v242, 7
  %v244 = vsub.s32 %v241, %v243
  %v245 = vrot.slane %v238, %v244
  %v247 = vsub.f32 %v155, %v245
  %v248 = vmul.f32 %v150, %v220
  %v249 = vmul.f32 %v152, %v224
  %v251 = vlaneseq
  %v252 = vshrl.u32 %v251, 7
  %v253 = vsub.s32 0, %v252
  %v254 = vrot.slane %v247, %v253
  %v255 = vlaneseq
  %v256 = vshrl.u32 %v255, 7
  %v257 = vsub.s32 1, %v256
  %v258 = vrot.slane %v247, %v257
  %v261 = vadd.f32 %v248, %v254
  %v262 = vadd.f32 %v249, %v258
  %v263 = vtanh.pop %v261
  %v264 = vtanh.pop %v262
  %v265 = vld [vmem:[%s4] sm:$0xff]
  %v266 = vld [vmem:[%s4 + $0x8] sm:$0xff]
  %v267 = vld [vmem:[%s4 + $0x10] sm:$0xff]
  %v268 = vld [vmem:[%s4 + $0x18] sm:$0xff]
  %v269 = vld [vmem:[%s4 + $0x20] sm:$0xff]
  %v270 = vld [vmem:[%s4 + $0x28] sm:$0xff]
  %v271 = vld [vmem:[%s4 + $0x30] sm:$0xff]
  %v272 = vld [vmem:[%s4 + $0x38] sm:$0xff]
  %v273 = vld [vmem:[%s4 + $0x40] sm:$0xff]
  %v274 = vld [vmem:[%s4 + $0x48] sm:$0xff]
  %v275 = vld [vmem:[%s4 + $0x50] sm:$0xff]
  %v276 = vld [vmem:[%s4 + $0x58] sm:$0xff]
  %v277 = vld [vmem:[%s4 + $0x60] sm:$0xff]
  %v278 = vld [vmem:[%s4 + $0x68] sm:$0xff]
  %v279 = vld [vmem:[%s4 + $0x70] sm:$0xff]
  %v280 = vld [vmem:[%s4 + $0x78] sm:$0xff]
  %v281 = vld [vmem:[%s4 + $0x80] sm:$0xff]
  %v282 = vld [vmem:[%s4 + $0x88] sm:$0xff]
  %v283 = vld [vmem:[%s4 + $0x90] sm:$0xff]
  %v284 = vld [vmem:[%s4 + $0x98] sm:$0xff]
  %v285 = vld [vmem:[%s4 + $0xa0] sm:$0xff]
  %v286 = vld [vmem:[%s4 + $0xa8] sm:$0xff]
  %v287 = vld [vmem:[%s4 + $0xb0] sm:$0xff]
  %v288 = vld [vmem:[%s4 + $0xb8] sm:$0xff]
  %v289 = vld [vmem:[%s4 + $0xc0] sm:$0xff]
  %v290 = vld [vmem:[%s4 + $0xc8] sm:$0xff]
  %v291 = vld [vmem:[%s4 + $0xd0] sm:$0xff]
  %v292 = vld [vmem:[%s4 + $0xd8] sm:$0xff]
  %v293 = vld [vmem:[%s4 + $0xe0] sm:$0xff]
  %v294 = vld [vmem:[%s4 + $0xe8] sm:$0xff]
  %v295 = vld [vmem:[%s4 + $0xf0] sm:$0xff]
  %v296 = vld [vmem:[%s4 + $0xf8] sm:$0xff]
  %297 = vmatprep.subr.mxu0 0.0
  %298 = vmatpush1.msra.mxu0 %v280
  %299 = vmatprep.subr.mxu0 0.0
  %300 = vmatpush1.msra.mxu0 %v279
  %301 = vmatprep.subr.mxu0 0.0
  %302 = vmatpush1.msra.mxu0 %v278
  %303 = vmatprep.subr.mxu0 0.0
  %304 = vmatpush1.msra.mxu0 %v277
  %305 = vmatprep.subr.mxu0 0.0
  %306 = vmatpush1.msra.mxu0 %v276
  %307 = vmatprep.subr.mxu0 0.0
  %308 = vmatpush1.msra.mxu0 %v275
  %309 = vmatprep.subr.mxu0 0.0
  %310 = vmatpush1.msra.mxu0 %v274
  %311 = vmatprep.subr.mxu0 0.0
  %312 = vmatpush1.msra.mxu0 %v273
  %313 = vmatprep.subr.mxu0 0.0
  %314 = vmatpush1.msra.mxu0 %v272
  %315 = vmatprep.subr.mxu0 0.0
  %316 = vmatpush1.msra.mxu0 %v271
  %317 = vmatprep.subr.mxu0 0.0
  %318 = vmatpush1.msra.mxu0 %v270
  %319 = vmatprep.subr.mxu0 0.0
  %320 = vmatpush1.msra.mxu0 %v269
  %321 = vmatprep.subr.mxu0 0.0
  %322 = vmatpush1.msra.mxu0 %v268
  %323 = vmatprep.subr.mxu0 0.0
  %324 = vmatpush1.msra.mxu0 %v267
  %325 = vmatprep.subr.mxu0 0.0
  %326 = vmatpush1.msra.mxu0 %v266
  %327 = vmatprep.subr.mxu0 0.0
  %328 = vmatpush1.msra.mxu0 %v265
  %329 = vmatprep.subr.mxu0 0.0
  %330 = vmatpush2.msra.mxu0 %v296
  %331 = vmatprep.subr.mxu0 0.0
  %332 = vmatpush2.msra.mxu0 %v295
  %333 = vmatprep.subr.mxu0 0.0
  %334 = vmatpush2.msra.mxu0 %v294
  %335 = vmatprep.subr.mxu0 0.0
  %336 = vmatpush2.msra.mxu0 %v293
  %337 = vmatprep.subr.mxu0 0.0
  %338 = vmatpush2.msra.mxu0 %v292
  %339 = vmatprep.subr.mxu0 0.0
  %340 = vmatpush2.msra.mxu0 %v291
  %341 = vmatprep.subr.mxu0 0.0
  %342 = vmatpush2.msra.mxu0 %v290
  %343 = vmatprep.subr.mxu0 0.0
  %344 = vmatpush2.msra.mxu0 %v289
  %345 = vmatprep.subr.mxu0 0.0
  %346 = vmatpush2.msra.mxu0 %v288
  %347 = vmatprep.subr.mxu0 0.0
  %348 = vmatpush2.msra.mxu0 %v287
  %349 = vmatprep.subr.mxu0 0.0
  %350 = vmatpush2.msra.mxu0 %v286
  %351 = vmatprep.subr.mxu0 0.0
  %352 = vmatpush2.msra.mxu0 %v285
  %353 = vmatprep.subr.mxu0 0.0
  %354 = vmatpush2.msra.mxu0 %v284
  %355 = vmatprep.subr.mxu0 0.0
  %356 = vmatpush2.msra.mxu0 %v283
  %357 = vmatprep.subr.mxu0 0.0
  %358 = vmatpush2.msra.mxu0 %v282
  %359 = vmatprep.subr.mxu0 0.0
  %360 = vmatpush2.msra.mxu0 %v281
  %361 = vmatprep.mubr.f32.mxu0 %v264
  %362 = vmatmul.mubr.f32.gmra.mxu0 %v263
  %v363 = vpop.f32.mrf.mxu0
  %v364 = vadd.f32 0.0, %v363
  %v365 = vpop.f32.mrf.mxu0
  %366 = vdwg.mxu0
  %v367 = vld [vmem:[%s5] sm:$0x1]
  %v368 = vld [vmem:[%s6] sm:$0x1]
  %v369 = vrot.slane %v364, 4
  %v370 = vadd.f32 %v364, %v369
  %v371 = vrot.slane %v370, 2
  %v372 = vadd.f32 %v370, %v371
  %v373 = vrot.slane %v372, 1
  %v374 = vadd.f32 %v372, %v373
  %v375 = vmul.f32 %v374, %v168
  %v376 = vmul.f32 %v364, %v364
  %v377 = vrot.slane %v376, 4
  %v378 = vadd.f32 %v376, %v377
  %v379 = vrot.slane %v378, 2
  %v380 = vadd.f32 %v378, %v379
  %v381 = vrot.slane %v380, 1
  %v382 = vadd.f32 %v380, %v381
  %v383 = vmul.f32 %v382, %v168
  %v384 = vmul.f32 %v375, %v375
  %v385 = vsub.f32 %v383, %v384
  %v386 = vmax.f32 %v385, 0.0
  %v387 = vadd.f32 %v386, 1e-05
  %v388 = vrsqrt.pop %v387
  %v389 = vmul.f32 %v367, %v388
  %v390 = vmul.f32 %v375, %v389
  %v391 = vsub.f32 %v368, %v390
  %v393 = vlaneseq
  %v394 = vshrl.u32 %v393, 7
  %v395 = vsub.s32 0, %v394
  %v396 = vrot.slane %v389, %v395
  %v398 = vmul.f32 %v364, %v396
  %v400 = vlaneseq
  %v401 = vshrl.u32 %v400, 7
  %v402 = vsub.s32 0, %v401
  %v403 = vrot.slane %v391, %v402
  %v405 = vadd.f32 %v398, %v403
  %v406 = vtanh.pop %v405
  %v407 = vld [vmem:[%s7] sm:$0xff]
  %v408 = vld [vmem:[%s7 + $0x8] sm:$0xff]
  %v409 = vld [vmem:[%s7 + $0x10] sm:$0xff]
  %v410 = vld [vmem:[%s7 + $0x18] sm:$0xff]
  %v411 = vld [vmem:[%s7 + $0x20] sm:$0xff]
  %v412 = vld [vmem:[%s7 + $0x28] sm:$0xff]
  %v413 = vld [vmem:[%s7 + $0x30] sm:$0xff]
  %v414 = vld [vmem:[%s7 + $0x38] sm:$0xff]
  %v415 = vld [vmem:[%s7 + $0x40] sm:$0xff]
  %v416 = vld [vmem:[%s7 + $0x48] sm:$0xff]
  %v417 = vld [vmem:[%s7 + $0x50] sm:$0xff]
  %v418 = vld [vmem:[%s7 + $0x58] sm:$0xff]
  %v419 = vld [vmem:[%s7 + $0x60] sm:$0xff]
  %v420 = vld [vmem:[%s7 + $0x68] sm:$0xff]
  %v421 = vld [vmem:[%s7 + $0x70] sm:$0xff]
  %v422 = vld [vmem:[%s7 + $0x78] sm:$0xff]
  %v423 = vld [vmem:[%s7 + $0x80] sm:$0xff]
  %v424 = vld [vmem:[%s7 + $0x88] sm:$0xff]
  %v425 = vld [vmem:[%s7 + $0x90] sm:$0xff]
  %v426 = vld [vmem:[%s7 + $0x98] sm:$0xff]
  %v427 = vld [vmem:[%s7 + $0xa0] sm:$0xff]
  %v428 = vld [vmem:[%s7 + $0xa8] sm:$0xff]
  %v429 = vld [vmem:[%s7 + $0xb0] sm:$0xff]
  %v430 = vld [vmem:[%s7 + $0xb8] sm:$0xff]
  %v431 = vld [vmem:[%s7 + $0xc0] sm:$0xff]
  %v432 = vld [vmem:[%s7 + $0xc8] sm:$0xff]
  %v433 = vld [vmem:[%s7 + $0xd0] sm:$0xff]
  %v434 = vld [vmem:[%s7 + $0xd8] sm:$0xff]
  %v435 = vld [vmem:[%s7 + $0xe0] sm:$0xff]
  %v436 = vld [vmem:[%s7 + $0xe8] sm:$0xff]
  %v437 = vld [vmem:[%s7 + $0xf0] sm:$0xff]
  %v438 = vld [vmem:[%s7 + $0xf8] sm:$0xff]
  %439 = vmatprep.subr.mxu0 %v438
  %440 = vmatpush1.msra.mxu0 %v437
  %441 = vmatprep.subr.mxu0 %v436
  %442 = vmatpush1.msra.mxu0 %v435
  %443 = vmatprep.subr.mxu0 %v434
  %444 = vmatpush1.msra.mxu0 %v433
  %445 = vmatprep.subr.mxu0 %v432
  %446 = vmatpush1.msra.mxu0 %v431
  %447 = vmatprep.subr.mxu0 %v430
  %448 = vmatpush1.msra.mxu0 %v429
  %449 = vmatprep.subr.mxu0 %v428
  %450 = vmatpush1.msra.mxu0 %v427
  %451 = vmatprep.subr.mxu0 %v426
  %452 = vmatpush1.msra.mxu0 %v425
  %453 = vmatprep.subr.mxu0 %v424
  %454 = vmatpush1.msra.mxu0 %v423
  %455 = vmatprep.subr.mxu0 %v422
  %456 = vmatpush1.msra.mxu0 %v421
  %457 = vmatprep.subr.mxu0 %v420
  %458 = vmatpush1.msra.mxu0 %v419
  %459 = vmatprep.subr.mxu0 %v418
  %460 = vmatpush1.msra.mxu0 %v417
  %461 = vmatprep.subr.mxu0 %v416
  %462 = vmatpush1.msra.mxu0 %v415
  %463 = vmatprep.subr.mxu0 %v414
  %464 = vmatpush1.msra.mxu0 %v413
  %465 = vmatprep.subr.mxu0 %v412
  %466 = vmatpush1.msra.mxu0 %v411
  %467 = vmatprep.subr.mxu0 %v410
  %468 = vmatpush1.msra.mxu0 %v409
  %469 = vmatprep.subr.mxu0 %v408
  %470 = vmatpush1.msra.mxu0 %v407
  %471 = vmatprep.subr.mxu0 0.0
  %472 = vmatpush2.msra.mxu0 0.0
  %473 = vmatprep.subr.mxu0 0.0
  %474 = vmatpush2.msra.mxu0 0.0
  %475 = vmatprep.subr.mxu0 0.0
  %476 = vmatpush2.msra.mxu0 0.0
  %477 = vmatprep.subr.mxu0 0.0
  %478 = vmatpush2.msra.mxu0 0.0
  %479 = vmatprep.subr.mxu0 0.0
  %480 = vmatpush2.msra.mxu0 0.0
  %481 = vmatprep.subr.mxu0 0.0
  %482 = vmatpush2.msra.mxu0 0.0
  %483 = vmatprep.subr.mxu0 0.0
  %484 = vmatpush2.msra.mxu0 0.0
  %485 = vmatprep.subr.mxu0 0.0
  %486 = vmatpush2.msra.mxu0 0.0
  %487 = vmatprep.subr.mxu0 0.0
  %488 = vmatpush2.msra.mxu0 0.0
  %489 = vmatprep.subr.mxu0 0.0
  %490 = vmatpush2.msra.mxu0 0.0
  %491 = vmatprep.subr.mxu0 0.0
  %492 = vmatpush2.msra.mxu0 0.0
  %493 = vmatprep.subr.mxu0 0.0
  %494 = vmatpush2.msra.mxu0 0.0
  %495 = vmatprep.subr.mxu0 0.0
  %496 = vmatpush2.msra.mxu0 0.0
  %497 = vmatprep.subr.mxu0 0.0
  %498 = vmatpush2.msra.mxu0 0.0
  %499 = vmatprep.subr.mxu0 0.0
  %500 = vmatpush2.msra.mxu0 0.0
  %501 = vmatprep.subr.mxu0 0.0
  %502 = vmatpush2.msra.mxu0 0.0
  %503 = vmatprep.mubr.f32.mxu0 0.0
  %504 = vmatmul.mubr.f32.gmra.mxu0 %v406
  %v505 = vpop.f32.mrf.mxu0
  %v506 = vadd.f32 0.0, %v505
  %v507 = vpop.f32.mrf.mxu0
  %v508 = vadd.f32 0.0, %v507
  %509 = vdwg.mxu0
  %v510 = vld [vmem:[%s8] sm:$0x3]
  %v511 = vld [vmem:[%s9] sm:$0x3]
  %v512 = vrot.slane %v506, 4
  %v513 = vadd.f32 %v506, %v512
  %v514 = vrot.slane %v513, 2
  %v515 = vadd.f32 %v513, %v514
  %v516 = vrot.slane %v515, 1
  %v517 = vadd.f32 %v515, %v516
  %v518 = vrot.slane %v508, 4
  %v519 = vadd.f32 %v508, %v518
  %v520 = vrot.slane %v519, 2
  %v521 = vadd.f32 %v519, %v520
  %v522 = vrot.slane %v521, 1
  %v523 = vadd.f32 %v521, %v522
  %v524 = vmul.f32 %v517, %v168
  %v525 = vmul.f32 %v523, %v168
  %v526 = vmul.f32 %v506, %v506
  %v527 = vmul.f32 %v508, %v508
  %v528 = vrot.slane %v526, 4
  %v529 = vadd.f32 %v526, %v528
  %v530 = vrot.slane %v529, 2
  %v531 = vadd.f32 %v529, %v530
  %v532 = vrot.slane %v531, 1
  %v533 = vadd.f32 %v531, %v532
  %v534 = vrot.slane %v527, 4
  %v535 = vadd.f32 %v527, %v534
  %v536 = vrot.slane %v535, 2
  %v537 = vadd.f32 %v535, %v536
  %v538 = vrot.slane %v537, 1
  %v539 = vadd.f32 %v537, %v538
  %v540 = vmul.f32 %v533, %v168
  %v541 = vmul.f32 %v539, %v168
  %v542 = vmul.f32 %v524, %v524
  %v543 = vmul.f32 %v525, %v525
  %v544 = vsub.f32 %v540, %v542
  %v545 = vsub.f32 %v541, %v543
  %v546 = vmax.f32 %v544, 0.0
  %v547 = vmax.f32 %v545, 0.0
  %v548 = vadd.f32 %v546, 1e-05
  %v549 = vadd.f32 %v547, 1e-05
  %v550 = vrsqrt.pop %v548
  %v551 = vrsqrt.pop %v549
  %v554 = vcombine.low %v550, %v551
  %v556 = vunpack.c.l.s4 1966171168
  %v557 = vunpack.c.0.s8 %v556
  %v558 = vlaneseq
  %v559 = vshrl.u32 %v558, 7
  %v560 = vsub.s32 %v557, %v559
  %v561 = vrot.slane %v554, %v560
  %v563 = vunpack.c.l.s4 1966171168
  %v564 = vunpack.c.0.s8 %v563
  %v565 = vlaneseq
  %v566 = vshrl.u32 %v565, 7
  %v567 = vsub.s32 %v564, %v566
  %v568 = vrot.slane %v561, %v567
  %v570 = vmul.f32 %v510, %v568
  %v572 = vlaneseq
  %v573 = vshrl.u32 %v572, 7
  %v574 = vsub.s32 0, %v573
  %v575 = vrot.slane %v570, %v574
  %v576 = vlaneseq
  %v577 = vshrl.u32 %v576, 7
  %v578 = vsub.s32 1, %v577
  %v579 = vrot.slane %v570, %v578
  %v582 = vmul.f32 %v524, %v575
  %v583 = vmul.f32 %v525, %v579
  %v586 = vcombine.low %v582, %v583
  %v588 = vunpack.c.l.s4 1966171168
  %v589 = vunpack.c.0.s8 %v588
  %v590 = vlaneseq
  %v591 = vshrl.u32 %v590, 7
  %v592 = vsub.s32 %v589, %v591
  %v593 = vrot.slane %v586, %v592
  %v595 = vunpack.c.l.s4 1966171168
  %v596 = vunpack.c.0.s8 %v595
  %v597 = vlaneseq
  %v598 = vshrl.u32 %v597, 7
  %v599 = vsub.s32 %v596, %v598
  %v600 = vrot.slane %v593, %v599
  %v602 = vsub.f32 %v511, %v600
  %v603 = vmul.f32 %v506, %v575
  %v604 = vmul.f32 %v508, %v579
  %v606 = vlaneseq
  %v607 = vshrl.u32 %v606, 7
  %v608 = vsub.s32 0, %v607
  %v609 = vrot.slane %v602, %v608
  %v610 = vlaneseq
  %v611 = vshrl.u32 %v610, 7
  %v612 = vsub.s32 1, %v611
  %v613 = vrot.slane %v602, %v612
  %v616 = vadd.f32 %v603, %v609
  %v617 = vadd.f32 %v604, %v613
  %v618 = vtanh.pop %v616
  %v619 = vtanh.pop %v617
  %v620 = vld [vmem:[%s10] sm:$0xff]
  %v621 = vld [vmem:[%s10 + $0x8] sm:$0xff]
  %v622 = vld [vmem:[%s10 + $0x10] sm:$0xff]
  %v623 = vld [vmem:[%s10 + $0x18] sm:$0xff]
  %v624 = vld [vmem:[%s10 + $0x20] sm:$0xff]
  %v625 = vld [vmem:[%s10 + $0x28] sm:$0xff]
  %v626 = vld [vmem:[%s10 + $0x30] sm:$0xff]
  %v627 = vld [vmem:[%s10 + $0x38] sm:$0xff]
  %v628 = vld [vmem:[%s10 + $0x40] sm:$0xff]
  %v629 = vld [vmem:[%s10 + $0x48] sm:$0xff]
  %v630 = vld [vmem:[%s10 + $0x50] sm:$0xff]
  %v631 = vld [vmem:[%s10 + $0x58] sm:$0xff]
  %v632 = vld [vmem:[%s10 + $0x60] sm:$0xff]
  %v633 = vld [vmem:[%s10 + $0x68] sm:$0xff]
  %v634 = vld [vmem:[%s10 + $0x70] sm:$0xff]
  %v635 = vld [vmem:[%s10 + $0x78] sm:$0xff]
  %v636 = vld [vmem:[%s10 + $0x80] sm:$0xff]
  %v637 = vld [vmem:[%s10 + $0x88] sm:$0xff]
  %v638 = vld [vmem:[%s10 + $0x90] sm:$0xff]
  %v639 = vld [vmem:[%s10 + $0x98] sm:$0xff]
  %v640 = vld [vmem:[%s10 + $0xa0] sm:$0xff]
  %v641 = vld [vmem:[%s10 + $0xa8] sm:$0xff]
  %v642 = vld [vmem:[%s10 + $0xb0] sm:$0xff]
  %v643 = vld [vmem:[%s10 + $0xb8] sm:$0xff]
  %v644 = vld [vmem:[%s10 + $0xc0] sm:$0xff]
  %v645 = vld [vmem:[%s10 + $0xc8] sm:$0xff]
  %v646 = vld [vmem:[%s10 + $0xd0] sm:$0xff]
  %v647 = vld [vmem:[%s10 + $0xd8] sm:$0xff]
  %v648 = vld [vmem:[%s10 + $0xe0] sm:$0xff]
  %v649 = vld [vmem:[%s10 + $0xe8] sm:$0xff]
  %v650 = vld [vmem:[%s10 + $0xf0] sm:$0xff]
  %v651 = vld [vmem:[%s10 + $0xf8] sm:$0xff]
  %v652 = vld [vmem:[%s10 + $0x100] sm:$0xff]
  %v653 = vld [vmem:[%s10 + $0x108] sm:$0xff]
  %v654 = vld [vmem:[%s10 + $0x110] sm:$0xff]
  %v655 = vld [vmem:[%s10 + $0x118] sm:$0xff]
  %v656 = vld [vmem:[%s10 + $0x120] sm:$0xff]
  %v657 = vld [vmem:[%s10 + $0x128] sm:$0xff]
  %v658 = vld [vmem:[%s10 + $0x130] sm:$0xff]
  %v659 = vld [vmem:[%s10 + $0x138] sm:$0xff]
  %v660 = vld [vmem:[%s10 + $0x140] sm:$0xff]
  %v661 = vld [vmem:[%s10 + $0x148] sm:$0xff]
  %v662 = vld [vmem:[%s10 + $0x150] sm:$0xff]
  %v663 = vld [vmem:[%s10 + $0x158] sm:$0xff]
  %v664 = vld [vmem:[%s10 + $0x160] sm:$0xff]
  %v665 = vld [vmem:[%s10 + $0x168] sm:$0xff]
  %v666 = vld [vmem:[%s10 + $0x170] sm:$0xff]
  %v667 = vld [vmem:[%s10 + $0x178] sm:$0xff]
  %v668 = vld [vmem:[%s10 + $0x180] sm:$0xff]
  %v669 = vld [vmem:[%s10 + $0x188] sm:$0xff]
  %v670 = vld [vmem:[%s10 + $0x190] sm:$0xff]
  %v671 = vld [vmem:[%s10 + $0x198] sm:$0xff]
  %v672 = vld [vmem:[%s10 + $0x1a0] sm:$0xff]
  %v673 = vld [vmem:[%s10 + $0x1a8] sm:$0xff]
  %v674 = vld [vmem:[%s10 + $0x1b0] sm:$0xff]
  %v675 = vld [vmem:[%s10 + $0x1b8] sm:$0xff]
  %v676 = vld [vmem:[%s10 + $0x1c0] sm:$0xff]
  %v677 = vld [vmem:[%s10 + $0x1c8] sm:$0xff]
  %v678 = vld [vmem:[%s10 + $0x1d0] sm:$0xff]
  %v679 = vld [vmem:[%s10 + $0x1d8] sm:$0xff]
  %v680 = vld [vmem:[%s10 + $0x1e0] sm:$0xff]
  %v681 = vld [vmem:[%s10 + $0x1e8] sm:$0xff]
  %v682 = vld [vmem:[%s10 + $0x1f0] sm:$0xff]
  %v683 = vld [vmem:[%s10 + $0x1f8] sm:$0xff]
  %684 = vmatprep.subr.mxu0 %v651
  %685 = vmatpush1.msra.mxu0 %v650
  %686 = vmatprep.subr.mxu0 %v649
  %687 = vmatpush1.msra.mxu0 %v648
  %688 = vmatprep.subr.mxu0 %v647
  %689 = vmatpush1.msra.mxu0 %v646
  %690 = vmatprep.subr.mxu0 %v645
  %691 = vmatpush1.msra.mxu0 %v644
  %692 = vmatprep.subr.mxu0 %v643
  %693 = vmatpush1.msra.mxu0 %v642
  %694 = vmatprep.subr.mxu0 %v641
  %695 = vmatpush1.msra.mxu0 %v640
  %696 = vmatprep.subr.mxu0 %v639
  %697 = vmatpush1.msra.mxu0 %v638
  %698 = vmatprep.subr.mxu0 %v637
  %699 = vmatpush1.msra.mxu0 %v636
  %700 = vmatprep.subr.mxu0 %v635
  %701 = vmatpush1.msra.mxu0 %v634
  %702 = vmatprep.subr.mxu0 %v633
  %703 = vmatpush1.msra.mxu0 %v632
  %704 = vmatprep.subr.mxu0 %v631
  %705 = vmatpush1.msra.mxu0 %v630
  %706 = vmatprep.subr.mxu0 %v629
  %707 = vmatpush1.msra.mxu0 %v628
  %708 = vmatprep.subr.mxu0 %v627
  %709 = vmatpush1.msra.mxu0 %v626
  %710 = vmatprep.subr.mxu0 %v625
  %711 = vmatpush1.msra.mxu0 %v624
  %712 = vmatprep.subr.mxu0 %v623
  %713 = vmatpush1.msra.mxu0 %v622
  %714 = vmatprep.subr.mxu0 %v621
  %715 = vmatpush1.msra.mxu0 %v620
  %716 = vmatprep.subr.mxu0 %v683
  %717 = vmatpush2.msra.mxu0 %v682
  %718 = vmatprep.subr.mxu0 %v681
  %719 = vmatpush2.msra.mxu0 %v680
  %720 = vmatprep.subr.mxu0 %v679
  %721 = vmatpush2.msra.mxu0 %v678
  %722 = vmatprep.subr.mxu0 %v677
  %723 = vmatpush2.msra.mxu0 %v676
  %724 = vmatprep.subr.mxu0 %v675
  %725 = vmatpush2.msra.mxu0 %v674
  %726 = vmatprep.subr.mxu0 %v673
  %727 = vmatpush2.msra.mxu0 %v672
  %728 = vmatprep.subr.mxu0 %v671
  %729 = vmatpush2.msra.mxu0 %v670
  %730 = vmatprep.subr.mxu0 %v669
  %731 = vmatpush2.msra.mxu0 %v668
  %732 = vmatprep.subr.mxu0 %v667
  %733 = vmatpush2.msra.mxu0 %v666
  %734 = vmatprep.subr.mxu0 %v665
  %735 = vmatpush2.msra.mxu0 %v664
  %736 = vmatprep.subr.mxu0 %v663
  %737 = vmatpush2.msra.mxu0 %v662
  %738 = vmatprep.subr.mxu0 %v661
  %739 = vmatpush2.msra.mxu0 %v660
  %740 = vmatprep.subr.mxu0 %v659
  %741 = vmatpush2.msra.mxu0 %v658
  %742 = vmatprep.subr.mxu0 %v657
  %743 = vmatpush2.msra.mxu0 %v656
  %744 = vmatprep.subr.mxu0 %v655
  %745 = vmatpush2.msra.mxu0 %v654
  %746 = vmatprep.subr.mxu0 %v653
  %747 = vmatpush2.msra.mxu0 %v652
  %748 = vmatprep.mubr.f32.mxu0 %v619
  %749 = vmatmul.mubr.f32.gmra.mxu0 %v618
  %v750 = vpop.f32.mrf.mxu0
  %v751 = vadd.f32 %v263, %v750
  %v752 = vpop.f32.mrf.mxu0
  %v753 = vadd.f32 %v264, %v752
  %754 = vdwg.mxu0
  %v755 = vld [vmem:[%s11] sm:$0x3]
  %v756 = vld [vmem:[%s12] sm:$0x3]
  %v757 = vrot.slane %v751, 4
  %v758 = vadd.f32 %v751, %v757
  %v759 = vrot.slane %v758, 2
  %v760 = vadd.f32 %v758, %v759
  %v761 = vrot.slane %v760, 1
  %v762 = vadd.f32 %v760, %v761
  %v763 = vrot.slane %v753, 4
  %v764 = vadd.f32 %v753, %v763
  %v765 = vrot.slane %v764, 2
  %v766 = vadd.f32 %v764, %v765
  %v767 = vrot.slane %v766, 1
  %v768 = vadd.f32 %v766, %v767
  %v769 = vmul.f32 %v762, %v168
  %v770 = vmul.f32 %v768, %v168
  %v771 = vmul.f32 %v751, %v751
  %v772 = vmul.f32 %v753, %v753
  %v773 = vrot.slane %v771, 4
  %v774 = vadd.f32 %v771, %v773
  %v775 = vrot.slane %v774, 2
  %v776 = vadd.f32 %v774, %v775
  %v777 = vrot.slane %v776, 1
  %v778 = vadd.f32 %v776, %v777
  %v779 = vrot.slane %v772, 4
  %v780 = vadd.f32 %v772, %v779
  %v781 = vrot.slane %v780, 2
  %v782 = vadd.f32 %v780, %v781
  %v783 = vrot.slane %v782, 1
  %v784 = vadd.f32 %v782, %v783
  %v785 = vmul.f32 %v778, %v168
  %v786 = vmul.f32 %v784, %v168
  %v787 = vmul.f32 %v769, %v769
  %v788 = vmul.f32 %v770, %v770
  %v789 = vsub.f32 %v785, %v787
  %v790 = vsub.f32 %v786, %v788
  %v791 = vmax.f32 %v789, 0.0
  %v792 = vmax.f32 %v790, 0.0
  %v793 = vadd.f32 %v791, 1e-05
  %v794 = vadd.f32 %v792, 1e-05
  %v795 = vrsqrt.pop %v793
  %v796 = vrsqrt.pop %v794
  %v799 = vcombine.low %v795, %v796
  %v801 = vunpack.c.l.s4 1966171168
  %v802 = vunpack.c.0.s8 %v801
  %v803 = vlaneseq
  %v804 = vshrl.u32 %v803, 7
  %v805 = vsub.s32 %v802, %v804
  %v806 = vrot.slane %v799, %v805
  %v808 = vunpack.c.l.s4 1966171168
  %v809 = vunpack.c.0.s8 %v808
  %v810 = vlaneseq
  %v811 = vshrl.u32 %v810, 7
  %v812 = vsub.s32 %v809, %v811
  %v813 = vrot.slane %v806, %v812
  %v815 = vmul.f32 %v755, %v813
  %v817 = vlaneseq
  %v818 = vshrl.u32 %v817, 7
  %v819 = vsub.s32 0, %v818
  %v820 = vrot.slane %v815, %v819
  %v821 = vlaneseq
  %v822 = vshrl.u32 %v821, 7
  %v823 = vsub.s32 1, %v822
  %v824 = vrot.slane %v815, %v823
  %v827 = vmul.f32 %v769, %v820
  %v828 = vmul.f32 %v770, %v824
  %v831 = vcombine.low %v827, %v828
  %v833 = vunpack.c.l.s4 1966171168
  %v834 = vunpack.c.0.s8 %v833
  %v835 = vlaneseq
  %v836 = vshrl.u32 %v835, 7
  %v837 = vsub.s32 %v834, %v836
  %v838 = vrot.slane %v831, %v837
  %v840 = vunpack.c.l.s4 1966171168
  %v841 = vunpack.c.0.s8 %v840
  %v842 = vlaneseq
  %v843 = vshrl.u32 %v842, 7
  %v844 = vsub.s32 %v841, %v843
  %v845 = vrot.slane %v838, %v844
  %v847 = vsub.f32 %v756, %v845
  %v848 = vmul.f32 %v751, %v820
  %v849 = vmul.f32 %v753, %v824
  %v851 = vlaneseq
  %v852 = vshrl.u32 %v851, 7
  %v853 = vsub.s32 0, %v852
  %v854 = vrot.slane %v847, %v853
  %v855 = vlaneseq
  %v856 = vshrl.u32 %v855, 7
  %v857 = vsub.s32 1, %v856
  %v858 = vrot.slane %v847, %v857
  %v861 = vadd.f32 %v848, %v854
  %v862 = vadd.f32 %v849, %v858
  %v863 = vtanh.pop %v861
  %v864 = vtanh.pop %v862
  %s865 = scalar_lea.vmem %s4, 256
  %v866 = vld [vmem:[%s865] sm:$0xff]
  %v867 = vld [vmem:[%s865 + $0x8] sm:$0xff]
  %v868 = vld [vmem:[%s865 + $0x10] sm:$0xff]
  %v869 = vld [vmem:[%s865 + $0x18] sm:$0xff]
  %v870 = vld [vmem:[%s865 + $0x20] sm:$0xff]
  %v871 = vld [vmem:[%s865 + $0x28] sm:$0xff]
  %v872 = vld [vmem:[%s865 + $0x30] sm:$0xff]
  %v873 = vld [vmem:[%s865 + $0x38] sm:$0xff]
  %v874 = vld [vmem:[%s865 + $0x40] sm:$0xff]
  %v875 = vld [vmem:[%s865 + $0x48] sm:$0xff]
  %v876 = vld [vmem:[%s865 + $0x50] sm:$0xff]
  %v877 = vld [vmem:[%s865 + $0x58] sm:$0xff]
  %v878 = vld [vmem:[%s865 + $0x60] sm:$0xff]
  %v879 = vld [vmem:[%s865 + $0x68] sm:$0xff]
  %v880 = vld [vmem:[%s865 + $0x70] sm:$0xff]
  %v881 = vld [vmem:[%s865 + $0x78] sm:$0xff]
  %v882 = vld [vmem:[%s865 + $0x80] sm:$0xff]
  %v883 = vld [vmem:[%s865 + $0x88] sm:$0xff]
  %v884 = vld [vmem:[%s865 + $0x90] sm:$0xff]
  %v885 = vld [vmem:[%s865 + $0x98] sm:$0xff]
  %v886 = vld [vmem:[%s865 + $0xa0] sm:$0xff]
  %v887 = vld [vmem:[%s865 + $0xa8] sm:$0xff]
  %v888 = vld [vmem:[%s865 + $0xb0] sm:$0xff]
  %v889 = vld [vmem:[%s865 + $0xb8] sm:$0xff]
  %v890 = vld [vmem:[%s865 + $0xc0] sm:$0xff]
  %v891 = vld [vmem:[%s865 + $0xc8] sm:$0xff]
  %v892 = vld [vmem:[%s865 + $0xd0] sm:$0xff]
  %v893 = vld [vmem:[%s865 + $0xd8] sm:$0xff]
  %v894 = vld [vmem:[%s865 + $0xe0] sm:$0xff]
  %v895 = vld [vmem:[%s865 + $0xe8] sm:$0xff]
  %v896 = vld [vmem:[%s865 + $0xf0] sm:$0xff]
  %v897 = vld [vmem:[%s865 + $0xf8] sm:$0xff]
  %898 = vmatprep.subr.mxu0 0.0
  %899 = vmatpush1.msra.mxu0 %v881
  %900 = vmatprep.subr.mxu0 0.0
  %901 = vmatpush1.msra.mxu0 %v880
  %902 = vmatprep.subr.mxu0 0.0
  %903 = vmatpush1.msra.mxu0 %v879
  %904 = vmatprep.subr.mxu0 0.0
  %905 = vmatpush1.msra.mxu0 %v878
  %906 = vmatprep.subr.mxu0 0.0
  %907 = vmatpush1.msra.mxu0 %v877
  %908 = vmatprep.subr.mxu0 0.0
  %909 = vmatpush1.msra.mxu0 %v876
  %910 = vmatprep.subr.mxu0 0.0
  %911 = vmatpush1.msra.mxu0 %v875
  %912 = vmatprep.subr.mxu0 0.0
  %913 = vmatpush1.msra.mxu0 %v874
  %914 = vmatprep.subr.mxu0 0.0
  %915 = vmatpush1.msra.mxu0 %v873
  %916 = vmatprep.subr.mxu0 0.0
  %917 = vmatpush1.msra.mxu0 %v872
  %918 = vmatprep.subr.mxu0 0.0
  %919 = vmatpush1.msra.mxu0 %v871
  %920 = vmatprep.subr.mxu0 0.0
  %921 = vmatpush1.msra.mxu0 %v870
  %922 = vmatprep.subr.mxu0 0.0
  %923 = vmatpush1.msra.mxu0 %v869
  %924 = vmatprep.subr.mxu0 0.0
  %925 = vmatpush1.msra.mxu0 %v868
  %926 = vmatprep.subr.mxu0 0.0
  %927 = vmatpush1.msra.mxu0 %v867
  %928 = vmatprep.subr.mxu0 0.0
  %929 = vmatpush1.msra.mxu0 %v866
  %930 = vmatprep.subr.mxu0 0.0
  %931 = vmatpush2.msra.mxu0 %v897
  %932 = vmatprep.subr.mxu0 0.0
  %933 = vmatpush2.msra.mxu0 %v896
  %934 = vmatprep.subr.mxu0 0.0
  %935 = vmatpush2.msra.mxu0 %v895
  %936 = vmatprep.subr.mxu0 0.0
  %937 = vmatpush2.msra.mxu0 %v894
  %938 = vmatprep.subr.mxu0 0.0
  %939 = vmatpush2.msra.mxu0 %v893
  %940 = vmatprep.subr.mxu0 0.0
  %941 = vmatpush2.msra.mxu0 %v892
  %942 = vmatprep.subr.mxu0 0.0
  %943 = vmatpush2.msra.mxu0 %v891
  %944 = vmatprep.subr.mxu0 0.0
  %945 = vmatpush2.msra.mxu0 %v890
  %946 = vmatprep.subr.mxu0 0.0
  %947 = vmatpush2.msra.mxu0 %v889
  %948 = vmatprep.subr.mxu0 0.0
  %949 = vmatpush2.msra.mxu0 %v888
  %950 = vmatprep.subr.mxu0 0.0
  %951 = vmatpush2.msra.mxu0 %v887
  %952 = vmatprep.subr.mxu0 0.0
  %953 = vmatpush2.msra.mxu0 %v886
  %954 = vmatprep.subr.mxu0 0.0
  %955 = vmatpush2.msra.mxu0 %v885
  %956 = vmatprep.subr.mxu0 0.0
  %957 = vmatpush2.msra.mxu0 %v884
  %958 = vmatprep.subr.mxu0 0.0
  %959 = vmatpush2.msra.mxu0 %v883
  %960 = vmatprep.subr.mxu0 0.0
  %961 = vmatpush2.msra.mxu0 %v882
  %962 = vmatprep.mubr.f32.mxu0 %v864
  %963 = vmatmul.mubr.f32.gmra.mxu0 %v863
  %v964 = vpop.f32.mrf.mxu0
  %v965 = vadd.f32 0.0, %v964
  %v966 = vpop.f32.mrf.mxu0
  %967 = vdwg.mxu0
  %s968 = scalar_lea.vmem %s5, 1
  %v969 = vld [vmem:[%s968] sm:$0x1]
  %s970 = scalar_lea.vmem %s6, 1
  %v971 = vld [vmem:[%s970] sm:$0x1]
  %v972 = vrot.slane %v965, 4
  %v973 = vadd.f32 %v965, %v972
  %v974 = vrot.slane %v973, 2
  %v975 = vadd.f32 %v973, %v974
  %v976 = vrot.slane %v975, 1
  %v977 = vadd.f32 %v975, %v976
  %v978 = vmul.f32 %v977, %v168
  %v979 = vmul.f32 %v965, %v965
  %v980 = vrot.slane %v979, 4
  %v981 = vadd.f32 %v979, %v980
  %v982 = vrot.slane %v981, 2
  %v983 = vadd.f32 %v981, %v982
  %v984 = vrot.slane %v983, 1
  %v985 = vadd.f32 %v983, %v984
  %v986 = vmul.f32 %v985, %v168
  %v987 = vmul.f32 %v978, %v978
  %v988 = vsub.f32 %v986, %v987
  %v989 = vmax.f32 %v988, 0.0
  %v990 = vadd.f32 %v989, 1e-05
  %v991 = vrsqrt.pop %v990
  %v992 = vmul.f32 %v969, %v991
  %v993 = vmul.f32 %v978, %v992
  %v994 = vsub.f32 %v971, %v993
  %v996 = vlaneseq
  %v997 = vshrl.u32 %v996, 7
  %v998 = vsub.s32 0, %v997
  %v999 = vrot.slane %v992, %v998
  %v1001 = vmul.f32 %v965, %v999
  %v1003 = vlaneseq
  %v1004 = vshrl.u32 %v1003, 7
  %v1005 = vsub.s32 0, %v1004
  %v1006 = vrot.slane %v994, %v1005
  %v1008 = vadd.f32 %v1001, %v1006
  %v1009 = vtanh.pop %v1008
  %s1010 = scalar_lea.vmem %s7, 256
  %v1011 = vld [vmem:[%s1010] sm:$0xff]
  %v1012 = vld [vmem:[%s1010 + $0x8] sm:$0xff]
  %v1013 = vld [vmem:[%s1010 + $0x10] sm:$0xff]
  %v1014 = vld [vmem:[%s1010 + $0x18] sm:$0xff]
  %v1015 = vld [vmem:[%s1010 + $0x20] sm:$0xff]
  %v1016 = vld [vmem:[%s1010 + $0x28] sm:$0xff]
  %v1017 = vld [vmem:[%s1010 + $0x30] sm:$0xff]
  %v1018 = vld [vmem:[%s1010 + $0x38] sm:$0xff]
  %v1019 = vld [vmem:[%s1010 + $0x40] sm:$0xff]
  %v1020 = vld [vmem:[%s1010 + $0x48] sm:$0xff]
  %v1021 = vld [vmem:[%s1010 + $0x50] sm:$0xff]
  %v1022 = vld [vmem:[%s1010 + $0x58] sm:$0xff]
  %v1023 = vld [vmem:[%s1010 + $0x60] sm:$0xff]
  %v1024 = vld [vmem:[%s1010 + $0x68] sm:$0xff]
  %v1025 = vld [vmem:[%s1010 + $0x70] sm:$0xff]
  %v1026 = vld [vmem:[%s1010 + $0x78] sm:$0xff]
  %v1027 = vld [vmem:[%s1010 + $0x80] sm:$0xff]
  %v1028 = vld [vmem:[%s1010 + $0x88] sm:$0xff]
  %v1029 = vld [vmem:[%s1010 + $0x90] sm:$0xff]
  %v1030 = vld [vmem:[%s1010 + $0x98] sm:$0xff]
  %v1031 = vld [vmem:[%s1010 + $0xa0] sm:$0xff]
  %v1032 = vld [vmem:[%s1010 + $0xa8] sm:$0xff]
  %v1033 = vld [vmem:[%s1010 + $0xb0] sm:$0xff]
  %v1034 = vld [vmem:[%s1010 + $0xb8] sm:$0xff]
  %v1035 = vld [vmem:[%s1010 + $0xc0] sm:$0xff]
  %v1036 = vld [vmem:[%s1010 + $0xc8] sm:$0xff]
  %v1037 = vld [vmem:[%s1010 + $0xd0] sm:$0xff]
  %v1038 = vld [vmem:[%s1010 + $0xd8] sm:$0xff]
  %v1039 = vld [vmem:[%s1010 + $0xe0] sm:$0xff]
  %v1040 = vld [vmem:[%s1010 + $0xe8] sm:$0xff]
  %v1041 = vld [vmem:[%s1010 + $0xf0] sm:$0xff]
  %v1042 = vld [vmem:[%s1010 + $0xf8] sm:$0xff]
  %1043 = vmatprep.subr.mxu0 %v1042
  %1044 = vmatpush1.msra.mxu0 %v1041
  %1045 = vmatprep.subr.mxu0 %v1040
  %1046 = vmatpush1.msra.mxu0 %v1039
  %1047 = vmatprep.subr.mxu0 %v1038
  %1048 = vmatpush1.msra.mxu0 %v1037
  %1049 = vmatprep.subr.mxu0 %v1036
  %1050 = vmatpush1.msra.mxu0 %v1035
  %1051 = vmatprep.subr.mxu0 %v1034
  %1052 = vmatpush1.msra.mxu0 %v1033
  %1053 = vmatprep.subr.mxu0 %v1032
  %1054 = vmatpush1.msra.mxu0 %v1031
  %1055 = vmatprep.subr.mxu0 %v1030
  %1056 = vmatpush1.msra.mxu0 %v1029
  %1057 = vmatprep.subr.mxu0 %v1028
  %1058 = vmatpush1.msra.mxu0 %v1027
  %1059 = vmatprep.subr.mxu0 %v1026
  %1060 = vmatpush1.msra.mxu0 %v1025
  %1061 = vmatprep.subr.mxu0 %v1024
  %1062 = vmatpush1.msra.mxu0 %v1023
  %1063 = vmatprep.subr.mxu0 %v1022
  %1064 = vmatpush1.msra.mxu0 %v1021
  %1065 = vmatprep.subr.mxu0 %v1020
  %1066 = vmatpush1.msra.mxu0 %v1019
  %1067 = vmatprep.subr.mxu0 %v1018
  %1068 = vmatpush1.msra.mxu0 %v1017
  %1069 = vmatprep.subr.mxu0 %v1016
  %1070 = vmatpush1.msra.mxu0 %v1015
  %1071 = vmatprep.subr.mxu0 %v1014
  %1072 = vmatpush1.msra.mxu0 %v1013
  %1073 = vmatprep.subr.mxu0 %v1012
  %1074 = vmatpush1.msra.mxu0 %v1011
  %1075 = vmatprep.subr.mxu0 0.0
  %1076 = vmatpush2.msra.mxu0 0.0
  %1077 = vmatprep.subr.mxu0 0.0
  %1078 = vmatpush2.msra.mxu0 0.0
  %1079 = vmatprep.subr.mxu0 0.0
  %1080 = vmatpush2.msra.mxu0 0.0
  %1081 = vmatprep.subr.mxu0 0.0
  %1082 = vmatpush2.msra.mxu0 0.0
  %1083 = vmatprep.subr.mxu0 0.0
  %1084 = vmatpush2.msra.mxu0 0.0
  %1085 = vmatprep.subr.mxu0 0.0
  %1086 = vmatpush2.msra.mxu0 0.0
  %1087 = vmatprep.subr.mxu0 0.0
  %1088 = vmatpush2.msra.mxu0 0.0
  %1089 = vmatprep.subr.mxu0 0.0
  %1090 = vmatpush2.msra.mxu0 0.0
  %1091 = vmatprep.subr.mxu0 0.0
  %1092 = vmatpush2.msra.mxu0 0.0
  %1093 = vmatprep.subr.mxu0 0.0
  %1094 = vmatpush2.msra.mxu0 0.0
  %1095 = vmatprep.subr.mxu0 0.0
  %1096 = vmatpush2.msra.mxu0 0.0
  %1097 = vmatprep.subr.mxu0 0.0
  %1098 = vmatpush2.msra.mxu0 0.0
  %1099 = vmatprep.subr.mxu0 0.0
  %1100 = vmatpush2.msra.mxu0 0.0
  %1101 = vmatprep.subr.mxu0 0.0
  %1102 = vmatpush2.msra.mxu0 0.0
  %1103 = vmatprep.subr.mxu0 0.0
  %1104 = vmatpush2.msra.mxu0 0.0
  %1105 = vmatprep.subr.mxu0 0.0
  %1106 = vmatpush2.msra.mxu0 0.0
  %1107 = vmatprep.mubr.f32.mxu0 0.0
  %1108 = vmatmul.mubr.f32.gmra.mxu0 %v1009
  %v1109 = vpop.f32.mrf.mxu0
  %v1110 = vadd.f32 0.0, %v1109
  %v1111 = vpop.f32.mrf.mxu0
  %v1112 = vadd.f32 0.0, %v1111
  %1113 = vdwg.mxu0
  %s1114 = scalar_lea.vmem %s8, 2
  %v1115 = vld [vmem:[%s1114] sm:$0x3]
  %s1116 = scalar_lea.vmem %s9, 2
  %v1117 = vld [vmem:[%s1116] sm:$0x3]
  %v1118 = vrot.slane %v1110, 4
  %v1119 = vadd.f32 %v1110, %v1118
  %v1120 = vrot.slane %v1119, 2
  %v1121 = vadd.f32 %v1119, %v1120
  %v1122 = vrot.slane %v1121, 1
  %v1123 = vadd.f32 %v1121, %v1122
  %v1124 = vrot.slane %v1112, 4
  %v1125 = vadd.f32 %v1112, %v1124
  %v1126 = vrot.slane %v1125, 2
  %v1127 = vadd.f32 %v1125, %v1126
  %v1128 = vrot.slane %v1127, 1
  %v1129 = vadd.f32 %v1127, %v1128
  %v1130 = vmul.f32 %v1123, %v168
  %v1131 = vmul.f32 %v1129, %v168
  %v1132 = vmul.f32 %v1110, %v1110
  %v1133 = vmul.f32 %v1112, %v1112
  %v1134 = vrot.slane %v1132, 4
  %v1135 = vadd.f32 %v1132, %v1134
  %v1136 = vrot.slane %v1135, 2
  %v1137 = vadd.f32 %v1135, %v1136
  %v1138 = vrot.slane %v1137, 1
  %v1139 = vadd.f32 %v1137, %v1138
  %v1140 = vrot.slane %v1133, 4
  %v1141 = vadd.f32 %v1133, %v1140
  %v1142 = vrot.slane %v1141, 2
  %v1143 = vadd.f32 %v1141, %v1142
  %v1144 = vrot.slane %v1143, 1
  %v1145 = vadd.f32 %v1143, %v1144
  %v1146 = vmul.f32 %v1139, %v168
  %v1147 = vmul.f32 %v1145, %v168
  %v1148 = vmul.f32 %v1130, %v1130
  %v1149 = vmul.f32 %v1131, %v1131
  %v1150 = vsub.f32 %v1146, %v1148
  %v1151 = vsub.f32 %v1147, %v1149
  %v1152 = vmax.f32 %v1150, 0.0
  %v1153 = vmax.f32 %v1151, 0.0
  %v1154 = vadd.f32 %v1152, 1e-05
  %v1155 = vadd.f32 %v1153, 1e-05
  %v1156 = vrsqrt.pop %v1154
  %v1157 = vrsqrt.pop %v1155
  %v1160 = vcombine.low %v1156, %v1157
  %v1162 = vunpack.c.l.s4 1966171168
  %v1163 = vunpack.c.0.s8 %v1162
  %v1164 = vlaneseq
  %v1165 = vshrl.u32 %v1164, 7
  %v1166 = vsub.s32 %v1163, %v1165
  %v1167 = vrot.slane %v1160, %v1166
  %v1169 = vunpack.c.l.s4 1966171168
  %v1170 = vunpack.c.0.s8 %v1169
  %v1171 = vlaneseq
  %v1172 = vshrl.u32 %v1171, 7
  %v1173 = vsub.s32 %v1170, %v1172
  %v1174 = vrot.slane %v1167, %v1173
  %v1176 = vmul.f32 %v1115, %v1174
  %v1178 = vlaneseq
  %v1179 = vshrl.u32 %v1178, 7
  %v1180 = vsub.s32 0, %v1179
  %v1181 = vrot.slane %v1176, %v1180
  %v1182 = vlaneseq
  %v1183 = vshrl.u32 %v1182, 7
  %v1184 = vsub.s32 1, %v1183
  %v1185 = vrot.slane %v1176, %v1184
  %v1188 = vmul.f32 %v1130, %v1181
  %v1189 = vmul.f32 %v1131, %v1185
  %v1192 = vcombine.low %v1188, %v1189
  %v1194 = vunpack.c.l.s4 1966171168
  %v1195 = vunpack.c.0.s8 %v1194
  %v1196 = vlaneseq
  %v1197 = vshrl.u32 %v1196, 7
  %v1198 = vsub.s32 %v1195, %v1197
  %v1199 = vrot.slane %v1192, %v1198
  %v1201 = vunpack.c.l.s4 1966171168
  %v1202 = vunpack.c.0.s8 %v1201
  %v1203 = vlaneseq
  %v1204 = vshrl.u32 %v1203, 7
  %v1205 = vsub.s32 %v1202, %v1204
  %v1206 = vrot.slane %v1199, %v1205
  %v1208 = vsub.f32 %v1117, %v1206
  %v1209 = vmul.f32 %v1110, %v1181
  %v1210 = vmul.f32 %v1112, %v1185
  %v1212 = vlaneseq
  %v1213 = vshrl.u32 %v1212, 7
  %v1214 = vsub.s32 0, %v1213
  %v1215 = vrot.slane %v1208, %v1214
  %v1216 = vlaneseq
  %v1217 = vshrl.u32 %v1216, 7
  %v1218 = vsub.s32 1, %v1217
  %v1219 = vrot.slane %v1208, %v1218
  %v1222 = vadd.f32 %v1209, %v1215
  %v1223 = vadd.f32 %v1210, %v1219
  %v1224 = vtanh.pop %v1222
  %v1225 = vtanh.pop %v1223
  %s1226 = scalar_lea.vmem %s10, 512
  %v1227 = vld [vmem:[%s1226] sm:$0xff]
  %v1228 = vld [vmem:[%s1226 + $0x8] sm:$0xff]
  %v1229 = vld [vmem:[%s1226 + $0x10] sm:$0xff]
  %v1230 = vld [vmem:[%s1226 + $0x18] sm:$0xff]
  %v1231 = vld [vmem:[%s1226 + $0x20] sm:$0xff]
  %v1232 = vld [vmem:[%s1226 + $0x28] sm:$0xff]
  %v1233 = vld [vmem:[%s1226 + $0x30] sm:$0xff]
  %v1234 = vld [vmem:[%s1226 + $0x38] sm:$0xff]
  %v1235 = vld [vmem:[%s1226 + $0x40] sm:$0xff]
  %v1236 = vld [vmem:[%s1226 + $0x48] sm:$0xff]
  %v1237 = vld [vmem:[%s1226 + $0x50] sm:$0xff]
  %v1238 = vld [vmem:[%s1226 + $0x58] sm:$0xff]
  %v1239 = vld [vmem:[%s1226 + $0x60] sm:$0xff]
  %v1240 = vld [vmem:[%s1226 + $0x68] sm:$0xff]
  %v1241 = vld [vmem:[%s1226 + $0x70] sm:$0xff]
  %v1242 = vld [vmem:[%s1226 + $0x78] sm:$0xff]
  %v1243 = vld [vmem:[%s1226 + $0x80] sm:$0xff]
  %v1244 = vld [vmem:[%s1226 + $0x88] sm:$0xff]
  %v1245 = vld [vmem:[%s1226 + $0x90] sm:$0xff]
  %v1246 = vld [vmem:[%s1226 + $0x98] sm:$0xff]
  %v1247 = vld [vmem:[%s1226 + $0xa0] sm:$0xff]
  %v1248 = vld [vmem:[%s1226 + $0xa8] sm:$0xff]
  %v1249 = vld [vmem:[%s1226 + $0xb0] sm:$0xff]
  %v1250 = vld [vmem:[%s1226 + $0xb8] sm:$0xff]
  %v1251 = vld [vmem:[%s1226 + $0xc0] sm:$0xff]
  %v1252 = vld [vmem:[%s1226 + $0xc8] sm:$0xff]
  %v1253 = vld [vmem:[%s1226 + $0xd0] sm:$0xff]
  %v1254 = vld [vmem:[%s1226 + $0xd8] sm:$0xff]
  %v1255 = vld [vmem:[%s1226 + $0xe0] sm:$0xff]
  %v1256 = vld [vmem:[%s1226 + $0xe8] sm:$0xff]
  %v1257 = vld [vmem:[%s1226 + $0xf0] sm:$0xff]
  %v1258 = vld [vmem:[%s1226 + $0xf8] sm:$0xff]
  %v1259 = vld [vmem:[%s1226 + $0x100] sm:$0xff]
  %v1260 = vld [vmem:[%s1226 + $0x108] sm:$0xff]
  %v1261 = vld [vmem:[%s1226 + $0x110] sm:$0xff]
  %v1262 = vld [vmem:[%s1226 + $0x118] sm:$0xff]
  %v1263 = vld [vmem:[%s1226 + $0x120] sm:$0xff]
  %v1264 = vld [vmem:[%s1226 + $0x128] sm:$0xff]
  %v1265 = vld [vmem:[%s1226 + $0x130] sm:$0xff]
  %v1266 = vld [vmem:[%s1226 + $0x138] sm:$0xff]
  %v1267 = vld [vmem:[%s1226 + $0x140] sm:$0xff]
  %v1268 = vld [vmem:[%s1226 + $0x148] sm:$0xff]
  %v1269 = vld [vmem:[%s1226 + $0x150] sm:$0xff]
  %v1270 = vld [vmem:[%s1226 + $0x158] sm:$0xff]
  %v1271 = vld [vmem:[%s1226 + $0x160] sm:$0xff]
  %v1272 = vld [vmem:[%s1226 + $0x168] sm:$0xff]
  %v1273 = vld [vmem:[%s1226 + $0x170] sm:$0xff]
  %v1274 = vld [vmem:[%s1226 + $0x178] sm:$0xff]
  %v1275 = vld [vmem:[%s1226 + $0x180] sm:$0xff]
  %v1276 = vld [vmem:[%s1226 + $0x188] sm:$0xff]
  %v1277 = vld [vmem:[%s1226 + $0x190] sm:$0xff]
  %v1278 = vld [vmem:[%s1226 + $0x198] sm:$0xff]
  %v1279 = vld [vmem:[%s1226 + $0x1a0] sm:$0xff]
  %v1280 = vld [vmem:[%s1226 + $0x1a8] sm:$0xff]
  %v1281 = vld [vmem:[%s1226 + $0x1b0] sm:$0xff]
  %v1282 = vld [vmem:[%s1226 + $0x1b8] sm:$0xff]
  %v1283 = vld [vmem:[%s1226 + $0x1c0] sm:$0xff]
  %v1284 = vld [vmem:[%s1226 + $0x1c8] sm:$0xff]
  %v1285 = vld [vmem:[%s1226 + $0x1d0] sm:$0xff]
  %v1286 = vld [vmem:[%s1226 + $0x1d8] sm:$0xff]
  %v1287 = vld [vmem:[%s1226 + $0x1e0] sm:$0xff]
  %v1288 = vld [vmem:[%s1226 + $0x1e8] sm:$0xff]
  %v1289 = vld [vmem:[%s1226 + $0x1f0] sm:$0xff]
  %v1290 = vld [vmem:[%s1226 + $0x1f8] sm:$0xff]
  %1291 = vmatprep.subr.mxu0 %v1258
  %1292 = vmatpush1.msra.mxu0 %v1257
  %1293 = vmatprep.subr.mxu0 %v1256
  %1294 = vmatpush1.msra.mxu0 %v1255
  %1295 = vmatprep.subr.mxu0 %v1254
  %1296 = vmatpush1.msra.mxu0 %v1253
  %1297 = vmatprep.subr.mxu0 %v1252
  %1298 = vmatpush1.msra.mxu0 %v1251
  %1299 = vmatprep.subr.mxu0 %v1250
  %1300 = vmatpush1.msra.mxu0 %v1249
  %1301 = vmatprep.subr.mxu0 %v1248
  %1302 = vmatpush1.msra.mxu0 %v1247
  %1303 = vmatprep.subr.mxu0 %v1246
  %1304 = vmatpush1.msra.mxu0 %v1245
  %1305 = vmatprep.subr.mxu0 %v1244
  %1306 = vmatpush1.msra.mxu0 %v1243
  %1307 = vmatprep.subr.mxu0 %v1242
  %1308 = vmatpush1.msra.mxu0 %v1241
  %1309 = vmatprep.subr.mxu0 %v1240
  %1310 = vmatpush1.msra.mxu0 %v1239
  %1311 = vmatprep.subr.mxu0 %v1238
  %1312 = vmatpush1.msra.mxu0 %v1237
  %1313 = vmatprep.subr.mxu0 %v1236
  %1314 = vmatpush1.msra.mxu0 %v1235
  %1315 = vmatprep.subr.mxu0 %v1234
  %1316 = vmatpush1.msra.mxu0 %v1233
  %1317 = vmatprep.subr.mxu0 %v1232
  %1318 = vmatpush1.msra.mxu0 %v1231
  %1319 = vmatprep.subr.mxu0 %v1230
  %1320 = vmatpush1.msra.mxu0 %v1229
  %1321 = vmatprep.subr.mxu0 %v1228
  %1322 = vmatpush1.msra.mxu0 %v1227
  %1323 = vmatprep.subr.mxu0 %v1290
  %1324 = vmatpush2.msra.mxu0 %v1289
  %1325 = vmatprep.subr.mxu0 %v1288
  %1326 = vmatpush2.msra.mxu0 %v1287
  %1327 = vmatprep.subr.mxu0 %v1286
  %1328 = vmatpush2.msra.mxu0 %v1285
  %1329 = vmatprep.subr.mxu0 %v1284
  %1330 = vmatpush2.msra.mxu0 %v1283
  %1331 = vmatprep.subr.mxu0 %v1282
  %1332 = vmatpush2.msra.mxu0 %v1281
  %1333 = vmatprep.subr.mxu0 %v1280
  %1334 = vmatpush2.msra.mxu0 %v1279
  %1335 = vmatprep.subr.mxu0 %v1278
  %1336 = vmatpush2.msra.mxu0 %v1277
  %1337 = vmatprep.subr.mxu0 %v1276
  %1338 = vmatpush2.msra.mxu0 %v1275
  %1339 = vmatprep.subr.mxu0 %v1274
  %1340 = vmatpush2.msra.mxu0 %v1273
  %1341 = vmatprep.subr.mxu0 %v1272
  %1342 = vmatpush2.msra.mxu0 %v1271
  %1343 = vmatprep.subr.mxu0 %v1270
  %1344 = vmatpush2.msra.mxu0 %v1269
  %1345 = vmatprep.subr.mxu0 %v1268
  %1346 = vmatpush2.msra.mxu0 %v1267
  %1347 = vmatprep.subr.mxu0 %v1266
  %1348 = vmatpush2.msra.mxu0 %v1265
  %1349 = vmatprep.subr.mxu0 %v1264
  %1350 = vmatpush2.msra.mxu0 %v1263
  %1351 = vmatprep.subr.mxu0 %v1262
  %1352 = vmatpush2.msra.mxu0 %v1261
  %1353 = vmatprep.subr.mxu0 %v1260
  %1354 = vmatpush2.msra.mxu0 %v1259
  %1355 = vmatprep.mubr.f32.mxu0 %v1225
  %1356 = vmatmul.mubr.f32.gmra.mxu0 %v1224
  %v1357 = vpop.f32.mrf.mxu0
  %v1358 = vadd.f32 %v863, %v1357
  %v1359 = vpop.f32.mrf.mxu0
  %v1360 = vadd.f32 %v864, %v1359
  %1361 = vdwg.mxu0
  %s1362 = scalar_lea.vmem %s11, 2
  %v1363 = vld [vmem:[%s1362] sm:$0x3]
  %s1364 = scalar_lea.vmem %s12, 2
  %v1365 = vld [vmem:[%s1364] sm:$0x3]
  %v1366 = vrot.slane %v1358, 4
  %v1367 = vadd.f32 %v1358, %v1366
  %v1368 = vrot.slane %v1367, 2
  %v1369 = vadd.f32 %v1367, %v1368
  %v1370 = vrot.slane %v1369, 1
  %v1371 = vadd.f32 %v1369, %v1370
  %v1372 = vrot.slane %v1360, 4
  %v1373 = vadd.f32 %v1360, %v1372
  %v1374 = vrot.slane %v1373, 2
  %v1375 = vadd.f32 %v1373, %v1374
  %v1376 = vrot.slane %v1375, 1
  %v1377 = vadd.f32 %v1375, %v1376
  %v1378 = vmul.f32 %v1371, %v168
  %v1379 = vmul.f32 %v1377, %v168
  %v1380 = vmul.f32 %v1358, %v1358
  %v1381 = vmul.f32 %v1360, %v1360
  %v1382 = vrot.slane %v1380, 4
  %v1383 = vadd.f32 %v1380, %v1382
  %v1384 = vrot.slane %v1383, 2
  %v1385 = vadd.f32 %v1383, %v1384
  %v1386 = vrot.slane %v1385, 1
  %v1387 = vadd.f32 %v1385, %v1386
  %v1388 = vrot.slane %v1381, 4
  %v1389 = vadd.f32 %v1381, %v1388
  %v1390 = vrot.slane %v1389, 2
  %v1391 = vadd.f32 %v1389, %v1390
  %v1392 = vrot.slane %v1391, 1
  %v1393 = vadd.f32 %v1391, %v1392
  %v1394 = vmul.f32 %v1387, %v168
  %v1395 = vmul.f32 %v1393, %v168
  %v1396 = vmul.f32 %v1378, %v1378
  %v1397 = vmul.f32 %v1379, %v1379
  %v1398 = vsub.f32 %v1394, %v1396
  %v1399 = vsub.f32 %v1395, %v1397
  %v1400 = vmax.f32 %v1398, 0.0
  %v1401 = vmax.f32 %v1399, 0.0
  %v1402 = vadd.f32 %v1400, 1e-05
  %v1403 = vadd.f32 %v1401, 1e-05
  %v1404 = vrsqrt.pop %v1402
  %v1405 = vrsqrt.pop %v1403
  %v1408 = vcombine.low %v1404, %v1405
  %v1410 = vunpack.c.l.s4 1966171168
  %v1411 = vunpack.c.0.s8 %v1410
  %v1412 = vlaneseq
  %v1413 = vshrl.u32 %v1412, 7
  %v1414 = vsub.s32 %v1411, %v1413
  %v1415 = vrot.slane %v1408, %v1414
  %v1417 = vunpack.c.l.s4 1966171168
  %v1418 = vunpack.c.0.s8 %v1417
  %v1419 = vlaneseq
  %v1420 = vshrl.u32 %v1419, 7
  %v1421 = vsub.s32 %v1418, %v1420
  %v1422 = vrot.slane %v1415, %v1421
  %v1424 = vmul.f32 %v1363, %v1422
  %v1426 = vlaneseq
  %v1427 = vshrl.u32 %v1426, 7
  %v1428 = vsub.s32 0, %v1427
  %v1429 = vrot.slane %v1424, %v1428
  %v1430 = vlaneseq
  %v1431 = vshrl.u32 %v1430, 7
  %v1432 = vsub.s32 1, %v1431
  %v1433 = vrot.slane %v1424, %v1432
  %v1436 = vmul.f32 %v1378, %v1429
  %v1437 = vmul.f32 %v1379, %v1433
  %v1440 = vcombine.low %v1436, %v1437
  %v1442 = vunpack.c.l.s4 1966171168
  %v1443 = vunpack.c.0.s8 %v1442
  %v1444 = vlaneseq
  %v1445 = vshrl.u32 %v1444, 7
  %v1446 = vsub.s32 %v1443, %v1445
  %v1447 = vrot.slane %v1440, %v1446
  %v1449 = vunpack.c.l.s4 1966171168
  %v1450 = vunpack.c.0.s8 %v1449
  %v1451 = vlaneseq
  %v1452 = vshrl.u32 %v1451, 7
  %v1453 = vsub.s32 %v1450, %v1452
  %v1454 = vrot.slane %v1447, %v1453
  %v1456 = vsub.f32 %v1365, %v1454
  %v1457 = vmul.f32 %v1358, %v1429
  %v1458 = vmul.f32 %v1360, %v1433
  %v1460 = vlaneseq
  %v1461 = vshrl.u32 %v1460, 7
  %v1462 = vsub.s32 0, %v1461
  %v1463 = vrot.slane %v1456, %v1462
  %v1464 = vlaneseq
  %v1465 = vshrl.u32 %v1464, 7
  %v1466 = vsub.s32 1, %v1465
  %v1467 = vrot.slane %v1456, %v1466
  %v1470 = vadd.f32 %v1457, %v1463
  %v1471 = vadd.f32 %v1458, %v1467
  %v1472 = vtanh.pop %v1470
  %v1473 = vtanh.pop %v1471
  %s1474 = scalar_lea.vmem %s4, 512
  %v1475 = vld [vmem:[%s1474] sm:$0xff]
  %v1476 = vld [vmem:[%s1474 + $0x8] sm:$0xff]
  %v1477 = vld [vmem:[%s1474 + $0x10] sm:$0xff]
  %v1478 = vld [vmem:[%s1474 + $0x18] sm:$0xff]
  %v1479 = vld [vmem:[%s1474 + $0x20] sm:$0xff]
  %v1480 = vld [vmem:[%s1474 + $0x28] sm:$0xff]
  %v1481 = vld [vmem:[%s1474 + $0x30] sm:$0xff]
  %v1482 = vld [vmem:[%s1474 + $0x38] sm:$0xff]
  %v1483 = vld [vmem:[%s1474 + $0x40] sm:$0xff]
  %v1484 = vld [vmem:[%s1474 + $0x48] sm:$0xff]
  %v1485 = vld [vmem:[%s1474 + $0x50] sm:$0xff]
  %v1486 = vld [vmem:[%s1474 + $0x58] sm:$0xff]
  %v1487 = vld [vmem:[%s1474 + $0x60] sm:$0xff]
  %v1488 = vld [vmem:[%s1474 + $0x68] sm:$0xff]
  %v1489 = vld [vmem:[%s1474 + $0x70] sm:$0xff]
  %v1490 = vld [vmem:[%s1474 + $0x78] sm:$0xff]
  %v1491 = vld [vmem:[%s1474 + $0x80] sm:$0xff]
  %v1492 = vld [vmem:[%s1474 + $0x88] sm:$0xff]
  %v1493 = vld [vmem:[%s1474 + $0x90] sm:$0xff]
  %v1494 = vld [vmem:[%s1474 + $0x98] sm:$0xff]
  %v1495 = vld [vmem:[%s1474 + $0xa0] sm:$0xff]
  %v1496 = vld [vmem:[%s1474 + $0xa8] sm:$0xff]
  %v1497 = vld [vmem:[%s1474 + $0xb0] sm:$0xff]
  %v1498 = vld [vmem:[%s1474 + $0xb8] sm:$0xff]
  %v1499 = vld [vmem:[%s1474 + $0xc0] sm:$0xff]
  %v1500 = vld [vmem:[%s1474 + $0xc8] sm:$0xff]
  %v1501 = vld [vmem:[%s1474 + $0xd0] sm:$0xff]
  %v1502 = vld [vmem:[%s1474 + $0xd8] sm:$0xff]
  %v1503 = vld [vmem:[%s1474 + $0xe0] sm:$0xff]
  %v1504 = vld [vmem:[%s1474 + $0xe8] sm:$0xff]
  %v1505 = vld [vmem:[%s1474 + $0xf0] sm:$0xff]
  %v1506 = vld [vmem:[%s1474 + $0xf8] sm:$0xff]
  %1507 = vmatprep.subr.mxu0 0.0
  %1508 = vmatpush1.msra.mxu0 %v1490
  %1509 = vmatprep.subr.mxu0 0.0
  %1510 = vmatpush1.msra.mxu0 %v1489
  %1511 = vmatprep.subr.mxu0 0.0
  %1512 = vmatpush1.msra.mxu0 %v1488
  %1513 = vmatprep.subr.mxu0 0.0
  %1514 = vmatpush1.msra.mxu0 %v1487
  %1515 = vmatprep.subr.mxu0 0.0
  %1516 = vmatpush1.msra.mxu0 %v1486
  %1517 = vmatprep.subr.mxu0 0.0
  %1518 = vmatpush1.msra.mxu0 %v1485
  %1519 = vmatprep.subr.mxu0 0.0
  %1520 = vmatpush1.msra.mxu0 %v1484
  %1521 = vmatprep.subr.mxu0 0.0
  %1522 = vmatpush1.msra.mxu0 %v1483
  %1523 = vmatprep.subr.mxu0 0.0
  %1524 = vmatpush1.msra.mxu0 %v1482
  %1525 = vmatprep.subr.mxu0 0.0
  %1526 = vmatpush1.msra.mxu0 %v1481
  %1527 = vmatprep.subr.mxu0 0.0
  %1528 = vmatpush1.msra.mxu0 %v1480
  %1529 = vmatprep.subr.mxu0 0.0
  %1530 = vmatpush1.msra.mxu0 %v1479
  %1531 = vmatprep.subr.mxu0 0.0
  %1532 = vmatpush1.msra.mxu0 %v1478
  %1533 = vmatprep.subr.mxu0 0.0
  %1534 = vmatpush1.msra.mxu0 %v1477
  %1535 = vmatprep.subr.mxu0 0.0
  %1536 = vmatpush1.msra.mxu0 %v1476
  %1537 = vmatprep.subr.mxu0 0.0
  %1538 = vmatpush1.msra.mxu0 %v1475
  %1539 = vmatprep.subr.mxu0 0.0
  %1540 = vmatpush2.msra.mxu0 %v1506
  %1541 = vmatprep.subr.mxu0 0.0
  %1542 = vmatpush2.msra.mxu0 %v1505
  %1543 = vmatprep.subr.mxu0 0.0
  %1544 = vmatpush2.msra.mxu0 %v1504
  %1545 = vmatprep.subr.mxu0 0.0
  %1546 = vmatpush2.msra.mxu0 %v1503
  %1547 = vmatprep.subr.mxu0 0.0
  %1548 = vmatpush2.msra.mxu0 %v1502
  %1549 = vmatprep.subr.mxu0 0.0
  %1550 = vmatpush2.msra.mxu0 %v1501
  %1551 = vmatprep.subr.mxu0 0.0
  %1552 = vmatpush2.msra.mxu0 %v1500
  %1553 = vmatprep.subr.mxu0 0.0
  %1554 = vmatpush2.msra.mxu0 %v1499
  %1555 = vmatprep.subr.mxu0 0.0
  %1556 = vmatpush2.msra.mxu0 %v1498
  %1557 = vmatprep.subr.mxu0 0.0
  %1558 = vmatpush2.msra.mxu0 %v1497
  %1559 = vmatprep.subr.mxu0 0.0
  %1560 = vmatpush2.msra.mxu0 %v1496
  %1561 = vmatprep.subr.mxu0 0.0
  %1562 = vmatpush2.msra.mxu0 %v1495
  %1563 = vmatprep.subr.mxu0 0.0
  %1564 = vmatpush2.msra.mxu0 %v1494
  %1565 = vmatprep.subr.mxu0 0.0
  %1566 = vmatpush2.msra.mxu0 %v1493
  %1567 = vmatprep.subr.mxu0 0.0
  %1568 = vmatpush2.msra.mxu0 %v1492
  %1569 = vmatprep.subr.mxu0 0.0
  %1570 = vmatpush2.msra.mxu0 %v1491
  %1571 = vmatprep.mubr.f32.mxu0 %v1473
  %1572 = vmatmul.mubr.f32.gmra.mxu0 %v1472
  %v1573 = vpop.f32.mrf.mxu0
  %v1574 = vadd.f32 0.0, %v1573
  %v1575 = vpop.f32.mrf.mxu0
  %1576 = vdwg.mxu0
  %s1577 = scalar_lea.vmem %s5, 2
  %v1578 = vld [vmem:[%s1577] sm:$0x1]
  %s1579 = scalar_lea.vmem %s6, 2
  %v1580 = vld [vmem:[%s1579] sm:$0x1]
  %v1581 = vrot.slane %v1574, 4
  %v1582 = vadd.f32 %v1574, %v1581
  %v1583 = vrot.slane %v1582, 2
  %v1584 = vadd.f32 %v1582, %v1583
  %v1585 = vrot.slane %v1584, 1
  %v1586 = vadd.f32 %v1584, %v1585
  %v1587 = vmul.f32 %v1586, %v168
  %v1588 = vmul.f32 %v1574, %v1574
  %v1589 = vrot.slane %v1588, 4
  %v1590 = vadd.f32 %v1588, %v1589
  %v1591 = vrot.slane %v1590, 2
  %v1592 = vadd.f32 %v1590, %v1591
  %v1593 = vrot.slane %v1592, 1
  %v1594 = vadd.f32 %v1592, %v1593
  %v1595 = vmul.f32 %v1594, %v168
  %v1596 = vmul.f32 %v1587, %v1587
  %v1597 = vsub.f32 %v1595, %v1596
  %v1598 = vmax.f32 %v1597, 0.0
  %v1599 = vadd.f32 %v1598, 1e-05
  %v1600 = vrsqrt.pop %v1599
  %v1601 = vmul.f32 %v1578, %v1600
  %v1602 = vmul.f32 %v1587, %v1601
  %v1603 = vsub.f32 %v1580, %v1602
  %v1605 = vlaneseq
  %v1606 = vshrl.u32 %v1605, 7
  %v1607 = vsub.s32 0, %v1606
  %v1608 = vrot.slane %v1601, %v1607
  %v1610 = vmul.f32 %v1574, %v1608
  %v1612 = vlaneseq
  %v1613 = vshrl.u32 %v1612, 7
  %v1614 = vsub.s32 0, %v1613
  %v1615 = vrot.slane %v1603, %v1614
  %v1617 = vadd.f32 %v1610, %v1615
  %v1618 = vtanh.pop %v1617
  %s1619 = scalar_lea.vmem %s7, 512
  %v1620 = vld [vmem:[%s1619] sm:$0xff]
  %v1621 = vld [vmem:[%s1619 + $0x8] sm:$0xff]
  %v1622 = vld [vmem:[%s1619 + $0x10] sm:$0xff]
  %v1623 = vld [vmem:[%s1619 + $0x18] sm:$0xff]
  %v1624 = vld [vmem:[%s1619 + $0x20] sm:$0xff]
  %v1625 = vld [vmem:[%s1619 + $0x28] sm:$0xff]
  %v1626 = vld [vmem:[%s1619 + $0x30] sm:$0xff]
  %v1627 = vld [vmem:[%s1619 + $0x38] sm:$0xff]
  %v1628 = vld [vmem:[%s1619 + $0x40] sm:$0xff]
  %v1629 = vld [vmem:[%s1619 + $0x48] sm:$0xff]
  %v1630 = vld [vmem:[%s1619 + $0x50] sm:$0xff]
  %v1631 = vld [vmem:[%s1619 + $0x58] sm:$0xff]
  %v1632 = vld [vmem:[%s1619 + $0x60] sm:$0xff]
  %v1633 = vld [vmem:[%s1619 + $0x68] sm:$0xff]
  %v1634 = vld [vmem:[%s1619 + $0x70] sm:$0xff]
  %v1635 = vld [vmem:[%s1619 + $0x78] sm:$0xff]
  %v1636 = vld [vmem:[%s1619 + $0x80] sm:$0xff]
  %v1637 = vld [vmem:[%s1619 + $0x88] sm:$0xff]
  %v1638 = vld [vmem:[%s1619 + $0x90] sm:$0xff]
  %v1639 = vld [vmem:[%s1619 + $0x98] sm:$0xff]
  %v1640 = vld [vmem:[%s1619 + $0xa0] sm:$0xff]
  %v1641 = vld [vmem:[%s1619 + $0xa8] sm:$0xff]
  %v1642 = vld [vmem:[%s1619 + $0xb0] sm:$0xff]
  %v1643 = vld [vmem:[%s1619 + $0xb8] sm:$0xff]
  %v1644 = vld [vmem:[%s1619 + $0xc0] sm:$0xff]
  %v1645 = vld [vmem:[%s1619 + $0xc8] sm:$0xff]
  %v1646 = vld [vmem:[%s1619 + $0xd0] sm:$0xff]
  %v1647 = vld [vmem:[%s1619 + $0xd8] sm:$0xff]
  %v1648 = vld [vmem:[%s1619 + $0xe0] sm:$0xff]
  %v1649 = vld [vmem:[%s1619 + $0xe8] sm:$0xff]
  %v1650 = vld [vmem:[%s1619 + $0xf0] sm:$0xff]
  %v1651 = vld [vmem:[%s1619 + $0xf8] sm:$0xff]
  %1652 = vmatprep.subr.mxu0 %v1651
  %1653 = vmatpush1.msra.mxu0 %v1650
  %1654 = vmatprep.subr.mxu0 %v1649
  %1655 = vmatpush1.msra.mxu0 %v1648
  %1656 = vmatprep.subr.mxu0 %v1647
  %1657 = vmatpush1.msra.mxu0 %v1646
  %1658 = vmatprep.subr.mxu0 %v1645
  %1659 = vmatpush1.msra.mxu0 %v1644
  %1660 = vmatprep.subr.mxu0 %v1643
  %1661 = vmatpush1.msra.mxu0 %v1642
  %1662 = vmatprep.subr.mxu0 %v1641
  %1663 = vmatpush1.msra.mxu0 %v1640
  %1664 = vmatprep.subr.mxu0 %v1639
  %1665 = vmatpush1.msra.mxu0 %v1638
  %1666 = vmatprep.subr.mxu0 %v1637
  %1667 = vmatpush1.msra.mxu0 %v1636
  %1668 = vmatprep.subr.mxu0 %v1635
  %1669 = vmatpush1.msra.mxu0 %v1634
  %1670 = vmatprep.subr.mxu0 %v1633
  %1671 = vmatpush1.msra.mxu0 %v1632
  %1672 = vmatprep.subr.mxu0 %v1631
  %1673 = vmatpush1.msra.mxu0 %v1630
  %1674 = vmatprep.subr.mxu0 %v1629
  %1675 = vmatpush1.msra.mxu0 %v1628
  %1676 = vmatprep.subr.mxu0 %v1627
  %1677 = vmatpush1.msra.mxu0 %v1626
  %1678 = vmatprep.subr.mxu0 %v1625
  %1679 = vmatpush1.msra.mxu0 %v1624
  %1680 = vmatprep.subr.mxu0 %v1623
  %1681 = vmatpush1.msra.mxu0 %v1622
  %1682 = vmatprep.subr.mxu0 %v1621
  %1683 = vmatpush1.msra.mxu0 %v1620
  %1684 = vmatprep.subr.mxu0 0.0
  %1685 = vmatpush2.msra.mxu0 0.0
  %1686 = vmatprep.subr.mxu0 0.0
  %1687 = vmatpush2.msra.mxu0 0.0
  %1688 = vmatprep.subr.mxu0 0.0
  %1689 = vmatpush2.msra.mxu0 0.0
  %1690 = vmatprep.subr.mxu0 0.0
  %1691 = vmatpush2.msra.mxu0 0.0
  %1692 = vmatprep.subr.mxu0 0.0
  %1693 = vmatpush2.msra.mxu0 0.0
  %1694 = vmatprep.subr.mxu0 0.0
  %1695 = vmatpush2.msra.mxu0 0.0
  %1696 = vmatprep.subr.mxu0 0.0
  %1697 = vmatpush2.msra.mxu0 0.0
  %1698 = vmatprep.subr.mxu0 0.0
  %1699 = vmatpush2.msra.mxu0 0.0
  %1700 = vmatprep.subr.mxu0 0.0
  %1701 = vmatpush2.msra.mxu0 0.0
  %1702 = vmatprep.subr.mxu0 0.0
  %1703 = vmatpush2.msra.mxu0 0.0
  %1704 = vmatprep.subr.mxu0 0.0
  %1705 = vmatpush2.msra.mxu0 0.0
  %1706 = vmatprep.subr.mxu0 0.0
  %1707 = vmatpush2.msra.mxu0 0.0
  %1708 = vmatprep.subr.mxu0 0.0
  %1709 = vmatpush2.msra.mxu0 0.0
  %1710 = vmatprep.subr.mxu0 0.0
  %1711 = vmatpush2.msra.mxu0 0.0
  %1712 = vmatprep.subr.mxu0 0.0
  %1713 = vmatpush2.msra.mxu0 0.0
  %1714 = vmatprep.subr.mxu0 0.0
  %1715 = vmatpush2.msra.mxu0 0.0
  %1716 = vmatprep.mubr.f32.mxu0 0.0
  %1717 = vmatmul.mubr.f32.gmra.mxu0 %v1618
  %v1718 = vpop.f32.mrf.mxu0
  %v1719 = vadd.f32 0.0, %v1718
  %v1720 = vpop.f32.mrf.mxu0
  %v1721 = vadd.f32 0.0, %v1720
  %1722 = vdwg.mxu0
  %s1723 = scalar_lea.vmem %s8, 4
  %v1724 = vld [vmem:[%s1723] sm:$0x3]
  %s1725 = scalar_lea.vmem %s9, 4
  %v1726 = vld [vmem:[%s1725] sm:$0x3]
  %v1727 = vrot.slane %v1719, 4
  %v1728 = vadd.f32 %v1719, %v1727
  %v1729 = vrot.slane %v1728, 2
  %v1730 = vadd.f32 %v1728, %v1729
  %v1731 = vrot.slane %v1730, 1
  %v1732 = vadd.f32 %v1730, %v1731
  %v1733 = vrot.slane %v1721, 4
  %v1734 = vadd.f32 %v1721, %v1733
  %v1735 = vrot.slane %v1734, 2
  %v1736 = vadd.f32 %v1734, %v1735
  %v1737 = vrot.slane %v1736, 1
  %v1738 = vadd.f32 %v1736, %v1737
  %v1739 = vmul.f32 %v1732, %v168
  %v1740 = vmul.f32 %v1738, %v168
  %v1741 = vmul.f32 %v1719, %v1719
  %v1742 = vmul.f32 %v1721, %v1721
  %v1743 = vrot.slane %v1741, 4
  %v1744 = vadd.f32 %v1741, %v1743
  %v1745 = vrot.slane %v1744, 2
  %v1746 = vadd.f32 %v1744, %v1745
  %v1747 = vrot.slane %v1746, 1
  %v1748 = vadd.f32 %v1746, %v1747
  %v1749 = vrot.slane %v1742, 4
  %v1750 = vadd.f32 %v1742, %v1749
  %v1751 = vrot.slane %v1750, 2
  %v1752 = vadd.f32 %v1750, %v1751
  %v1753 = vrot.slane %v1752, 1
  %v1754 = vadd.f32 %v1752, %v1753
  %v1755 = vmul.f32 %v1748, %v168
  %v1756 = vmul.f32 %v1754, %v168
  %v1757 = vmul.f32 %v1739, %v1739
  %v1758 = vmul.f32 %v1740, %v1740
  %v1759 = vsub.f32 %v1755, %v1757
  %v1760 = vsub.f32 %v1756, %v1758
  %v1761 = vmax.f32 %v1759, 0.0
  %v1762 = vmax.f32 %v1760, 0.0
  %v1763 = vadd.f32 %v1761, 1e-05
  %v1764 = vadd.f32 %v1762, 1e-05
  %v1765 = vrsqrt.pop %v1763
  %v1766 = vrsqrt.pop %v1764
  %v1769 = vcombine.low %v1765, %v1766
  %v1771 = vunpack.c.l.s4 1966171168
  %v1772 = vunpack.c.0.s8 %v1771
  %v1773 = vlaneseq
  %v1774 = vshrl.u32 %v1773, 7
  %v1775 = vsub.s32 %v1772, %v1774
  %v1776 = vrot.slane %v1769, %v1775
  %v1778 = vunpack.c.l.s4 1966171168
  %v1779 = vunpack.c.0.s8 %v1778
  %v1780 = vlaneseq
  %v1781 = vshrl.u32 %v1780, 7
  %v1782 = vsub.s32 %v1779, %v1781
  %v1783 = vrot.slane %v1776, %v1782
  %v1785 = vmul.f32 %v1724, %v1783
  %v1787 = vlaneseq
  %v1788 = vshrl.u32 %v1787, 7
  %v1789 = vsub.s32 0, %v1788
  %v1790 = vrot.slane %v1785, %v1789
  %v1791 = vlaneseq
  %v1792 = vshrl.u32 %v1791, 7
  %v1793 = vsub.s32 1, %v1792
  %v1794 = vrot.slane %v1785, %v1793
  %v1797 = vmul.f32 %v1739, %v1790
  %v1798 = vmul.f32 %v1740, %v1794
  %v1801 = vcombine.low %v1797, %v1798
  %v1803 = vunpack.c.l.s4 1966171168
  %v1804 = vunpack.c.0.s8 %v1803
  %v1805 = vlaneseq
  %v1806 = vshrl.u32 %v1805, 7
  %v1807 = vsub.s32 %v1804, %v1806
  %v1808 = vrot.slane %v1801, %v1807
  %v1810 = vunpack.c.l.s4 1966171168
  %v1811 = vunpack.c.0.s8 %v1810
  %v1812 = vlaneseq
  %v1813 = vshrl.u32 %v1812, 7
  %v1814 = vsub.s32 %v1811, %v1813
  %v1815 = vrot.slane %v1808, %v1814
  %v1817 = vsub.f32 %v1726, %v1815
  %v1818 = vmul.f32 %v1719, %v1790
  %v1819 = vmul.f32 %v1721, %v1794
  %v1821 = vlaneseq
  %v1822 = vshrl.u32 %v1821, 7
  %v1823 = vsub.s32 0, %v1822
  %v1824 = vrot.slane %v1817, %v1823
  %v1825 = vlaneseq
  %v1826 = vshrl.u32 %v1825, 7
  %v1827 = vsub.s32 1, %v1826
  %v1828 = vrot.slane %v1817, %v1827
  %v1831 = vadd.f32 %v1818, %v1824
  %v1832 = vadd.f32 %v1819, %v1828
  %v1833 = vtanh.pop %v1831
  %v1834 = vtanh.pop %v1832
  %s1835 = scalar_lea.vmem %s10, 1024
  %v1836 = vld [vmem:[%s1835] sm:$0xff]
  %v1837 = vld [vmem:[%s1835 + $0x8] sm:$0xff]
  %v1838 = vld [vmem:[%s1835 + $0x10] sm:$0xff]
  %v1839 = vld [vmem:[%s1835 + $0x18] sm:$0xff]
  %v1840 = vld [vmem:[%s1835 + $0x20] sm:$0xff]
  %v1841 = vld [vmem:[%s1835 + $0x28] sm:$0xff]
  %v1842 = vld [vmem:[%s1835 + $0x30] sm:$0xff]
  %v1843 = vld [vmem:[%s1835 + $0x38] sm:$0xff]
  %v1844 = vld [vmem:[%s1835 + $0x40] sm:$0xff]
  %v1845 = vld [vmem:[%s1835 + $0x48] sm:$0xff]
  %v1846 = vld [vmem:[%s1835 + $0x50] sm:$0xff]
  %v1847 = vld [vmem:[%s1835 + $0x58] sm:$0xff]
  %v1848 = vld [vmem:[%s1835 + $0x60] sm:$0xff]
  %v1849 = vld [vmem:[%s1835 + $0x68] sm:$0xff]
  %v1850 = vld [vmem:[%s1835 + $0x70] sm:$0xff]
  %v1851 = vld [vmem:[%s1835 + $0x78] sm:$0xff]
  %v1852 = vld [vmem:[%s1835 + $0x80] sm:$0xff]
  %v1853 = vld [vmem:[%s1835 + $0x88] sm:$0xff]
  %v1854 = vld [vmem:[%s1835 + $0x90] sm:$0xff]
  %v1855 = vld [vmem:[%s1835 + $0x98] sm:$0xff]
  %v1856 = vld [vmem:[%s1835 + $0xa0] sm:$0xff]
  %v1857 = vld [vmem:[%s1835 + $0xa8] sm:$0xff]
  %v1858 = vld [vmem:[%s1835 + $0xb0] sm:$0xff]
  %v1859 = vld [vmem:[%s1835 + $0xb8] sm:$0xff]
  %v1860 = vld [vmem:[%s1835 + $0xc0] sm:$0xff]
  %v1861 = vld [vmem:[%s1835 + $0xc8] sm:$0xff]
  %v1862 = vld [vmem:[%s1835 + $0xd0] sm:$0xff]
  %v1863 = vld [vmem:[%s1835 + $0xd8] sm:$0xff]
  %v1864 = vld [vmem:[%s1835 + $0xe0] sm:$0xff]
  %v1865 = vld [vmem:[%s1835 + $0xe8] sm:$0xff]
  %v1866 = vld [vmem:[%s1835 + $0xf0] sm:$0xff]
  %v1867 = vld [vmem:[%s1835 + $0xf8] sm:$0xff]
  %v1868 = vld [vmem:[%s1835 + $0x100] sm:$0xff]
  %v1869 = vld [vmem:[%s1835 + $0x108] sm:$0xff]
  %v1870 = vld [vmem:[%s1835 + $0x110] sm:$0xff]
  %v1871 = vld [vmem:[%s1835 + $0x118] sm:$0xff]
  %v1872 = vld [vmem:[%s1835 + $0x120] sm:$0xff]
  %v1873 = vld [vmem:[%s1835 + $0x128] sm:$0xff]
  %v1874 = vld [vmem:[%s1835 + $0x130] sm:$0xff]
  %v1875 = vld [vmem:[%s1835 + $0x138] sm:$0xff]
  %v1876 = vld [vmem:[%s1835 + $0x140] sm:$0xff]
  %v1877 = vld [vmem:[%s1835 + $0x148] sm:$0xff]
  %v1878 = vld [vmem:[%s1835 + $0x150] sm:$0xff]
  %v1879 = vld [vmem:[%s1835 + $0x158] sm:$0xff]
  %v1880 = vld [vmem:[%s1835 + $0x160] sm:$0xff]
  %v1881 = vld [vmem:[%s1835 + $0x168] sm:$0xff]
  %v1882 = vld [vmem:[%s1835 + $0x170] sm:$0xff]
  %v1883 = vld [vmem:[%s1835 + $0x178] sm:$0xff]
  %v1884 = vld [vmem:[%s1835 + $0x180] sm:$0xff]
  %v1885 = vld [vmem:[%s1835 + $0x188] sm:$0xff]
  %v1886 = vld [vmem:[%s1835 + $0x190] sm:$0xff]
  %v1887 = vld [vmem:[%s1835 + $0x198] sm:$0xff]
  %v1888 = vld [vmem:[%s1835 + $0x1a0] sm:$0xff]
  %v1889 = vld [vmem:[%s1835 + $0x1a8] sm:$0xff]
  %v1890 = vld [vmem:[%s1835 + $0x1b0] sm:$0xff]
  %v1891 = vld [vmem:[%s1835 + $0x1b8] sm:$0xff]
  %v1892 = vld [vmem:[%s1835 + $0x1c0] sm:$0xff]
  %v1893 = vld [vmem:[%s1835 + $0x1c8] sm:$0xff]
  %v1894 = vld [vmem:[%s1835 + $0x1d0] sm:$0xff]
  %v1895 = vld [vmem:[%s1835 + $0x1d8] sm:$0xff]
  %v1896 = vld [vmem:[%s1835 + $0x1e0] sm:$0xff]
  %v1897 = vld [vmem:[%s1835 + $0x1e8] sm:$0xff]
  %v1898 = vld [vmem:[%s1835 + $0x1f0] sm:$0xff]
  %v1899 = vld [vmem:[%s1835 + $0x1f8] sm:$0xff]
  %1900 = vmatprep.subr.mxu0 %v1867
  %1901 = vmatpush1.msra.mxu0 %v1866
  %1902 = vmatprep.subr.mxu0 %v1865
  %1903 = vmatpush1.msra.mxu0 %v1864
  %1904 = vmatprep.subr.mxu0 %v1863
  %1905 = vmatpush1.msra.mxu0 %v1862
  %1906 = vmatprep.subr.mxu0 %v1861
  %1907 = vmatpush1.msra.mxu0 %v1860
  %1908 = vmatprep.subr.mxu0 %v1859
  %1909 = vmatpush1.msra.mxu0 %v1858
  %1910 = vmatprep.subr.mxu0 %v1857
  %1911 = vmatpush1.msra.mxu0 %v1856
  %1912 = vmatprep.subr.mxu0 %v1855
  %1913 = vmatpush1.msra.mxu0 %v1854
  %1914 = vmatprep.subr.mxu0 %v1853
  %1915 = vmatpush1.msra.mxu0 %v1852
  %1916 = vmatprep.subr.mxu0 %v1851
  %1917 = vmatpush1.msra.mxu0 %v1850
  %1918 = vmatprep.subr.mxu0 %v1849
  %1919 = vmatpush1.msra.mxu0 %v1848
  %1920 = vmatprep.subr.mxu0 %v1847
  %1921 = vmatpush1.msra.mxu0 %v1846
  %1922 = vmatprep.subr.mxu0 %v1845
  %1923 = vmatpush1.msra.mxu0 %v1844
  %1924 = vmatprep.subr.mxu0 %v1843
  %1925 = vmatpush1.msra.mxu0 %v1842
  %1926 = vmatprep.subr.mxu0 %v1841
  %1927 = vmatpush1.msra.mxu0 %v1840
  %1928 = vmatprep.subr.mxu0 %v1839
  %1929 = vmatpush1.msra.mxu0 %v1838
  %1930 = vmatprep.subr.mxu0 %v1837
  %1931 = vmatpush1.msra.mxu0 %v1836
  %1932 = vmatprep.subr.mxu0 %v1899
  %1933 = vmatpush2.msra.mxu0 %v1898
  %1934 = vmatprep.subr.mxu0 %v1897
  %1935 = vmatpush2.msra.mxu0 %v1896
  %1936 = vmatprep.subr.mxu0 %v1895
  %1937 = vmatpush2.msra.mxu0 %v1894
  %1938 = vmatprep.subr.mxu0 %v1893
  %1939 = vmatpush2.msra.mxu0 %v1892
  %1940 = vmatprep.subr.mxu0 %v1891
  %1941 = vmatpush2.msra.mxu0 %v1890
  %1942 = vmatprep.subr.mxu0 %v1889
  %1943 = vmatpush2.msra.mxu0 %v1888
  %1944 = vmatprep.subr.mxu0 %v1887
  %1945 = vmatpush2.msra.mxu0 %v1886
  %1946 = vmatprep.subr.mxu0 %v1885
  %1947 = vmatpush2.msra.mxu0 %v1884
  %1948 = vmatprep.subr.mxu0 %v1883
  %1949 = vmatpush2.msra.mxu0 %v1882
  %1950 = vmatprep.subr.mxu0 %v1881
  %1951 = vmatpush2.msra.mxu0 %v1880
  %1952 = vmatprep.subr.mxu0 %v1879
  %1953 = vmatpush2.msra.mxu0 %v1878
  %1954 = vmatprep.subr.mxu0 %v1877
  %1955 = vmatpush2.msra.mxu0 %v1876
  %1956 = vmatprep.subr.mxu0 %v1875
  %1957 = vmatpush2.msra.mxu0 %v1874
  %1958 = vmatprep.subr.mxu0 %v1873
  %1959 = vmatpush2.msra.mxu0 %v1872
  %1960 = vmatprep.subr.mxu0 %v1871
  %1961 = vmatpush2.msra.mxu0 %v1870
  %1962 = vmatprep.subr.mxu0 %v1869
  %1963 = vmatpush2.msra.mxu0 %v1868
  %1964 = vmatprep.mubr.f32.mxu0 %v1834
  %1965 = vmatmul.mubr.f32.gmra.mxu0 %v1833
  %v1966 = vpop.f32.mrf.mxu0
  %v1967 = vadd.f32 %v1472, %v1966
  %v1968 = vpop.f32.mrf.mxu0
  %v1969 = vadd.f32 %v1473, %v1968
  %1970 = vdwg.mxu0
  %s1971 = scalar_lea.vmem %s11, 4
  %v1972 = vld [vmem:[%s1971] sm:$0x3]
  %s1973 = scalar_lea.vmem %s12, 4
  %v1974 = vld [vmem:[%s1973] sm:$0x3]
  %v1975 = vrot.slane %v1967, 4
  %v1976 = vadd.f32 %v1967, %v1975
  %v1977 = vrot.slane %v1976, 2
  %v1978 = vadd.f32 %v1976, %v1977
  %v1979 = vrot.slane %v1978, 1
  %v1980 = vadd.f32 %v1978, %v1979
  %v1981 = vrot.slane %v1969, 4
  %v1982 = vadd.f32 %v1969, %v1981
  %v1983 = vrot.slane %v1982, 2
  %v1984 = vadd.f32 %v1982, %v1983
  %v1985 = vrot.slane %v1984, 1
  %v1986 = vadd.f32 %v1984, %v1985
  %v1987 = vmul.f32 %v1980, %v168
  %v1988 = vmul.f32 %v1986, %v168
  %v1989 = vmul.f32 %v1967, %v1967
  %v1990 = vmul.f32 %v1969, %v1969
  %v1991 = vrot.slane %v1989, 4
  %v1992 = vadd.f32 %v1989, %v1991
  %v1993 = vrot.slane %v1992, 2
  %v1994 = vadd.f32 %v1992, %v1993
  %v1995 = vrot.slane %v1994, 1
  %v1996 = vadd.f32 %v1994, %v1995
  %v1997 = vrot.slane %v1990, 4
  %v1998 = vadd.f32 %v1990, %v1997
  %v1999 = vrot.slane %v1998, 2
  %v2000 = vadd.f32 %v1998, %v1999
  %v2001 = vrot.slane %v2000, 1
  %v2002 = vadd.f32 %v2000, %v2001
  %v2003 = vmul.f32 %v1996, %v168
  %v2004 = vmul.f32 %v2002, %v168
  %v2005 = vmul.f32 %v1987, %v1987
  %v2006 = vmul.f32 %v1988, %v1988
  %v2007 = vsub.f32 %v2003, %v2005
  %v2008 = vsub.f32 %v2004, %v2006
  %v2009 = vmax.f32 %v2007, 0.0
  %v2010 = vmax.f32 %v2008, 0.0
  %v2011 = vadd.f32 %v2009, 1e-05
  %v2012 = vadd.f32 %v2010, 1e-05
  %v2013 = vrsqrt.pop %v2011
  %v2014 = vrsqrt.pop %v2012
  %v2017 = vcombine.low %v2013, %v2014
  %v2019 = vunpack.c.l.s4 1966171168
  %v2020 = vunpack.c.0.s8 %v2019
  %v2021 = vlaneseq
  %v2022 = vshrl.u32 %v2021, 7
  %v2023 = vsub.s32 %v2020, %v2022
  %v2024 = vrot.slane %v2017, %v2023
  %v2026 = vunpack.c.l.s4 1966171168
  %v2027 = vunpack.c.0.s8 %v2026
  %v2028 = vlaneseq
  %v2029 = vshrl.u32 %v2028, 7
  %v2030 = vsub.s32 %v2027, %v2029
  %v2031 = vrot.slane %v2024, %v2030
  %v2033 = vmul.f32 %v1972, %v2031
  %v2035 = vlaneseq
  %v2036 = vshrl.u32 %v2035, 7
  %v2037 = vsub.s32 0, %v2036
  %v2038 = vrot.slane %v2033, %v2037
  %v2039 = vlaneseq
  %v2040 = vshrl.u32 %v2039, 7
  %v2041 = vsub.s32 1, %v2040
  %v2042 = vrot.slane %v2033, %v2041
  %v2045 = vmul.f32 %v1987, %v2038
  %v2046 = vmul.f32 %v1988, %v2042
  %v2049 = vcombine.low %v2045, %v2046
  %v2051 = vunpack.c.l.s4 1966171168
  %v2052 = vunpack.c.0.s8 %v2051
  %v2053 = vlaneseq
  %v2054 = vshrl.u32 %v2053, 7
  %v2055 = vsub.s32 %v2052, %v2054
  %v2056 = vrot.slane %v2049, %v2055
  %v2058 = vunpack.c.l.s4 1966171168
  %v2059 = vunpack.c.0.s8 %v2058
  %v2060 = vlaneseq
  %v2061 = vshrl.u32 %v2060, 7
  %v2062 = vsub.s32 %v2059, %v2061
  %v2063 = vrot.slane %v2056, %v2062
  %v2065 = vsub.f32 %v1974, %v2063
  %v2066 = vmul.f32 %v1967, %v2038
  %v2067 = vmul.f32 %v1969, %v2042
  %v2069 = vlaneseq
  %v2070 = vshrl.u32 %v2069, 7
  %v2071 = vsub.s32 0, %v2070
  %v2072 = vrot.slane %v2065, %v2071
  %v2073 = vlaneseq
  %v2074 = vshrl.u32 %v2073, 7
  %v2075 = vsub.s32 1, %v2074
  %v2076 = vrot.slane %v2065, %v2075
  %v2079 = vadd.f32 %v2066, %v2072
  %v2080 = vadd.f32 %v2067, %v2076
  %v2081 = vtanh.pop %v2079
  %v2082 = vtanh.pop %v2080
  %v2083 = vld [vmem:[%s13] sm:$0xff]
  %v2084 = vld [vmem:[%s13 + $0x8] sm:$0xff]
  %v2085 = vld [vmem:[%s13 + $0x10] sm:$0xff]
  %v2086 = vld [vmem:[%s13 + $0x18] sm:$0xff]
  %v2087 = vld [vmem:[%s13 + $0x20] sm:$0xff]
  %v2088 = vld [vmem:[%s13 + $0x28] sm:$0xff]
  %v2089 = vld [vmem:[%s13 + $0x30] sm:$0xff]
  %v2090 = vld [vmem:[%s13 + $0x38] sm:$0xff]
  %v2091 = vld [vmem:[%s13 + $0x40] sm:$0xff]
  %v2092 = vld [vmem:[%s13 + $0x48] sm:$0xff]
  %v2093 = vld [vmem:[%s13 + $0x50] sm:$0xff]
  %v2094 = vld [vmem:[%s13 + $0x58] sm:$0xff]
  %v2095 = vld [vmem:[%s13 + $0x60] sm:$0xff]
  %v2096 = vld [vmem:[%s13 + $0x68] sm:$0xff]
  %v2097 = vld [vmem:[%s13 + $0x70] sm:$0xff]
  %v2098 = vld [vmem:[%s13 + $0x78] sm:$0xff]
  %v2099 = vld [vmem:[%s13 + $0x80] sm:$0xff]
  %v2100 = vld [vmem:[%s13 + $0x88] sm:$0xff]
  %v2101 = vld [vmem:[%s13 + $0x90] sm:$0xff]
  %v2102 = vld [vmem:[%s13 + $0x98] sm:$0xff]
  %v2103 = vld [vmem:[%s13 + $0xa0] sm:$0xff]
  %v2104 = vld [vmem:[%s13 + $0xa8] sm:$0xff]
  %v2105 = vld [vmem:[%s13 + $0xb0] sm:$0xff]
  %v2106 = vld [vmem:[%s13 + $0xb8] sm:$0xff]
  %v2107 = vld [vmem:[%s13 + $0xc0] sm:$0xff]
  %v2108 = vld [vmem:[%s13 + $0xc8] sm:$0xff]
  %v2109 = vld [vmem:[%s13 + $0xd0] sm:$0xff]
  %v2110 = vld [vmem:[%s13 + $0xd8] sm:$0xff]
  %v2111 = vld [vmem:[%s13 + $0xe0] sm:$0xff]
  %v2112 = vld [vmem:[%s13 + $0xe8] sm:$0xff]
  %v2113 = vld [vmem:[%s13 + $0xf0] sm:$0xff]
  %v2114 = vld [vmem:[%s13 + $0xf8] sm:$0xff]
  %v2115 = vld [vmem:[%s14] sm:$0x1]
  %v2117 = vlaneseq
  %v2118 = vshrl.u32 %v2117, 7
  %v2119 = vsub.s32 0, %v2118
  %v2120 = vrot.slane %v2115, %v2119
  %2122 = vmatprep.subr.mxu0 0.0
  %2123 = vmatpush1.msra.mxu0 %v2098
  %2124 = vmatprep.subr.mxu0 0.0
  %2125 = vmatpush1.msra.mxu0 %v2097
  %2126 = vmatprep.subr.mxu0 0.0
  %2127 = vmatpush1.msra.mxu0 %v2096
  %2128 = vmatprep.subr.mxu0 0.0
  %2129 = vmatpush1.msra.mxu0 %v2095
  %2130 = vmatprep.subr.mxu0 0.0
  %2131 = vmatpush1.msra.mxu0 %v2094
  %2132 = vmatprep.subr.mxu0 0.0
  %2133 = vmatpush1.msra.mxu0 %v2093
  %2134 = vmatprep.subr.mxu0 0.0
  %2135 = vmatpush1.msra.mxu0 %v2092
  %2136 = vmatprep.subr.mxu0 0.0
  %2137 = vmatpush1.msra.mxu0 %v2091
  %2138 = vmatprep.subr.mxu0 0.0
  %2139 = vmatpush1.msra.mxu0 %v2090
  %2140 = vmatprep.subr.mxu0 0.0
  %2141 = vmatpush1.msra.mxu0 %v2089
  %2142 = vmatprep.subr.mxu0 0.0
  %2143 = vmatpush1.msra.mxu0 %v2088
  %2144 = vmatprep.subr.mxu0 0.0
  %2145 = vmatpush1.msra.mxu0 %v2087
  %2146 = vmatprep.subr.mxu0 0.0
  %2147 = vmatpush1.msra.mxu0 %v2086
  %2148 = vmatprep.subr.mxu0 0.0
  %2149 = vmatpush1.msra.mxu0 %v2085
  %2150 = vmatprep.subr.mxu0 0.0
  %2151 = vmatpush1.msra.mxu0 %v2084
  %2152 = vmatprep.subr.mxu0 0.0
  %2153 = vmatpush1.msra.mxu0 %v2083
  %2154 = vmatprep.subr.mxu0 0.0
  %2155 = vmatpush2.msra.mxu0 %v2114
  %2156 = vmatprep.subr.mxu0 0.0
  %2157 = vmatpush2.msra.mxu0 %v2113
  %2158 = vmatprep.subr.mxu0 0.0
  %2159 = vmatpush2.msra.mxu0 %v2112
  %2160 = vmatprep.subr.mxu0 0.0
  %2161 = vmatpush2.msra.mxu0 %v2111
  %2162 = vmatprep.subr.mxu0 0.0
  %2163 = vmatpush2.msra.mxu0 %v2110
  %2164 = vmatprep.subr.mxu0 0.0
  %2165 = vmatpush2.msra.mxu0 %v2109
  %2166 = vmatprep.subr.mxu0 0.0
  %2167 = vmatpush2.msra.mxu0 %v2108
  %2168 = vmatprep.subr.mxu0 0.0
  %2169 = vmatpush2.msra.mxu0 %v2107
  %2170 = vmatprep.subr.mxu0 0.0
  %2171 = vmatpush2.msra.mxu0 %v2106
  %2172 = vmatprep.subr.mxu0 0.0
  %2173 = vmatpush2.msra.mxu0 %v2105
  %2174 = vmatprep.subr.mxu0 0.0
  %2175 = vmatpush2.msra.mxu0 %v2104
  %2176 = vmatprep.subr.mxu0 0.0
  %2177 = vmatpush2.msra.mxu0 %v2103
  %2178 = vmatprep.subr.mxu0 0.0
  %2179 = vmatpush2.msra.mxu0 %v2102
  %2180 = vmatprep.subr.mxu0 0.0
  %2181 = vmatpush2.msra.mxu0 %v2101
  %2182 = vmatprep.subr.mxu0 0.0
  %2183 = vmatpush2.msra.mxu0 %v2100
  %2184 = vmatprep.subr.mxu0 0.0
  %2185 = vmatpush2.msra.mxu0 %v2099
  %2186 = vmatprep.mubr.f32.mxu0 %v2082
  %2187 = vmatmul.mubr.f32.gmra.mxu0 %v2081
  %v2188 = vpop.f32.mrf.mxu0
  %v2189 = vadd.f32 %v2120, %v2188
  %v2190 = vpop.f32.mrf.mxu0
  %2191 = vdwg.mxu0
  %2192 = vst [vmem:[%s15] sm:$0xff] %v2189
  // Predicated region
  $region62: #{mynet_forward.1} parent=0 // pred_check
    _
  $region63: #{mynet_forward.1} parent=0 // pred_check_branch
    %2194 = sbr.rel (0) target = $region65
  $region64: #{mynet_forward.1} parent=0 // pred_region
    _
  $region65: #{mynet_forward.1} parent=0 // pred_fallthru
    _
  // Predicated region
  $region66: #{mynet_forward.1} parent=0 // pred_check
    _
  $region67: #{mynet_forward.1} parent=0 // pred_check_branch
    %2196 = sbr.rel (0) target = $region69
  $region68: #{mynet_forward.1} parent=0 // pred_region
    _
  $region69: #{mynet_forward.1} parent=0 // pred_fallthru
    _

</llo_original>
